<compile_context>
chip_gen: v7x
topology: tpu7x:2x2x1
jax: 0.10.0
libtpu: 0.0.40
codegen_flags: <defaults>
</compile_context>

<pallas_src>
import functools

import jax
import jax.numpy as jnp
from jax import lax
from jax.experimental import pallas as pl
from jax.experimental.pallas import tpu as pltpu

_EPS = 1e-12


def _sum_to_11(x):
    """Reduce a 2-D array to shape (1, 1): lane reduce, then sublane reduce."""
    return jnp.sum(jnp.sum(x, axis=1, keepdims=True), axis=0, keepdims=True)


def _smooth_l1(a, b):
    """Branch-free elementwise smooth-L1 (beta=1): m = min(|d|,1); m*(|d|-m/2)."""
    ad = jnp.abs(a - b)
    m = jnp.minimum(ad, 1.0)
    return m * (ad - 0.5 * m)


def _rkd_kernel(tile, w_ref, s_ref, t_ref, o_ref):
    # w_ref: (2,) f32 in SMEM -> [w_dist, w_angle]
    # s_ref / t_ref: (N, Dp) f32, whole-resident in VMEM (same block every step)
    # o_ref: (1, 1, 1) per-tile partial of the (already weighted) loss
    n, dp = s_ref.shape
    i0 = pl.multiple_of(pl.program_id(0) * tile, tile)

    s = s_ref[...]
    t = t_ref[...]
    ones_row = jnp.ones((1, dp), jnp.float32)

    def gram_rowsq(f):
        # Gram on the MXU (f32 accumulation) + (1, N) row of squared norms via
        # a tiny ones-vector matmul (no transposes, no masked XLU reductions).
        gram = lax.dot_general(f, f, (((1,), (1,)), ((), ())),
                               preferred_element_type=jnp.float32)        # (N, N)
        sq_row = lax.dot_general(ones_row, f * f, (((1,), (1,)), ((), ())),
                                 preferred_element_type=jnp.float32)      # (1, N)
        return gram, sq_row

    gram_s, sqr_s = gram_rowsq(s)
    gram_t, sqr_t = gram_rowsq(t)

    # --------------------- rkd_angle: this tile's rows i ---------------------
    col = lax.broadcasted_iota(jnp.int32, (tile, n), 1)
    row = lax.broadcasted_iota(jnp.int32, (tile, n), 0) + i0
    is_self = col == row                                                   # j == i

    def angle_slab(f_ref, f, gram, sq_row):
        f_tile = f_ref[pl.ds(i0, tile), :]                                 # (T, Dp)
        gi = lax.dot_general(f_tile, f, (((1,), (1,)), ((), ())),
                             preferred_element_type=jnp.float32)           # (T, N) = G[i, :]
        gii = jnp.sum(f_tile * f_tile, axis=1, keepdims=True)              # (T, 1) = G[i, i]
        ssq = jnp.maximum(gii + sq_row - 2.0 * gi, 0.0)                    # ||f_j - f_i||^2
        # x / max(||x||, eps) == x * rsqrt(max(||x||^2, eps^2))   (F.normalize)
        r = lax.rsqrt(jnp.maximum(ssq, _EPS * _EPS))                       # (T, N)
        # Exact zeros at j == i (F.normalize maps the zero vector to zero);
        # also guards the tiny-numerator * huge-rsqrt cancellation case.
        r = jnp.where(is_self, 0.0, r)
        # Gram identity: (f_j - f_i).(f_k - f_i) = G[j,k] - G[i,k] - G[i,j] + G[i,i]
        num = (gram[None, :, :] - gi[:, None, :] - gi[:, :, None]
               + gii[:, :, None])                                          # (T, N, N)
        return num * (r[:, :, None] * r[:, None, :])                       # (T, N, N)

    sa = angle_slab(s_ref, s, gram_s, sqr_s)
    ta = angle_slab(t_ref, t, gram_t, sqr_t)
    angle_sum = _sum_to_11(jnp.sum(_smooth_l1(sa, ta), axis=0))            # (1, 1)

    w_dist = w_ref[0]
    w_angle = w_ref[1]
    o_ref[...] = jnp.reshape((w_angle / float(n * n * n)) * angle_sum, (1, 1, 1))

    # --------------------- rkd_dist: added exactly once (tile 0) ---------------------
    @pl.when(pl.program_id(0) == 0)
    def _():
        rr = lax.broadcasted_iota(jnp.int32, (n, n), 0)
        cc = lax.broadcasted_iota(jnp.int32, (n, n), 1)
        diag = rr == cc

        def norm_pdist(f, gram, sq_row):
            sq_col = jnp.sum(f * f, axis=1, keepdims=True)                 # (N, 1)
            d2 = jnp.maximum(sq_col + sq_row - 2.0 * gram, _EPS)
            d = jnp.where(diag, 0.0, jnp.sqrt(d2))
            # Clamping d2 at eps makes every off-diagonal distance > 0, so the
            # ">0" mean is sum(d) / (n*(n-1)) with a compile-time count.
            return d * (float(n * (n - 1)) / _sum_to_11(d))

        ns = norm_pdist(s, gram_s, sqr_s)
        nt = norm_pdist(t, gram_t, sqr_t)
        dist_sum = _sum_to_11(_smooth_l1(ns, nt))
        o_ref[...] = o_ref[...] + jnp.reshape(
            (w_dist / float(n * n)) * dist_sum, (1, 1, 1))


def _pick_tile(n):
    for cand in (8, 16):
        if n % cand == 0:
            return cand
    return n  # small / odd batch: single tile


def rkd_loss(student_logits, teacher_logits, w_dist=3.0, w_angle=3.0):
    assert student_logits.shape == teacher_logits.shape
    n, d = student_logits.shape
    s = student_logits.astype(jnp.float32)
    t = teacher_logits.astype(jnp.float32)

    # Mean-center: invariant for pairwise distances and for the difference
    # vectors of the angle term, keeps the gram-identity cancellation conditioned.
    s = s - jnp.mean(s, axis=0, keepdims=True)
    t = t - jnp.mean(t, axis=0, keepdims=True)

    # Zero-pad the feature (lane) axis to a multiple of 128: a no-op for
    # distances/angles, lane-dense operands for the MXU.  (Never pad N: extra
    # rows would change the distance mean and the angle statistics.)
    d_pad = int(pl.cdiv(d, 128)) * 128
    if d_pad != d:
        s = jnp.pad(s, ((0, 0), (0, d_pad - d)))
        t = jnp.pad(t, ((0, 0), (0, d_pad - d)))
    # TODO(synk): for vocab-sized D, stream the gram pass over a D reduction
    # grid axis instead of keeping s/t whole-resident in VMEM.

    tile = _pick_tile(n)
    n_tiles = n // tile
    w = jnp.asarray([w_dist, w_angle], dtype=jnp.float32)

    parts = pl.pallas_call(
        functools.partial(_rkd_kernel, tile),
        out_shape=jax.ShapeDtypeStruct((n_tiles, 1, 1), jnp.float32),
        grid=(n_tiles,),
        in_specs=[
            pl.BlockSpec(memory_space=pltpu.SMEM),           # [w_dist, w_angle]
            pl.BlockSpec((n, d_pad), lambda i: (0, 0)),       # student, resident
            pl.BlockSpec((n, d_pad), lambda i: (0, 0)),       # teacher, resident
        ],
        out_specs=pl.BlockSpec((1, 1, 1), lambda i: (i, 0, 0)),
        compiler_params=pltpu.CompilerParams(
            # Tiles are independent -> shard the O(N^3) work across both v7x TCs.
            dimension_semantics=("parallel",),
        ),
    )(w, s, t)
    return jnp.sum(parts)


# ---------------- pure-JAX reference (correctness sanity check) ----------------
def _rkd_loss_ref(s, t, w_dist=3.0, w_angle=3.0):
    eps = 1e-12
    hp = jax.lax.Precision.HIGHEST

    def pdist(f):
        sq = jnp.sum(f * f, axis=1)
        gram = jnp.einsum("id,jd->ij", f, f, precision=hp)
        d2 = jnp.maximum(sq[None, :] + sq[:, None] - 2.0 * gram, eps)
        d = jnp.sqrt(d2)
        n = f.shape[0]
        return d * (1.0 - jnp.eye(n, dtype=d.dtype))

    def smooth_l1_mean(a, b):
        diff = a - b
        ad = jnp.abs(diff)
        return jnp.mean(jnp.where(ad < 1.0, 0.5 * diff * diff, ad - 0.5))

    def norm_dist(f):
        d = pdist(f)
        m = jnp.sum(jnp.where(d > 0, d, 0.0)) / jnp.sum((d > 0).astype(d.dtype))
        return d / m

    dist_loss = smooth_l1_mean(norm_dist(s), norm_dist(t))

    def angle(f):
        vd = f[None, :, :] - f[:, None, :]
        nrm = jnp.maximum(jnp.linalg.norm(vd, axis=2, keepdims=True), eps)
        vdn = vd / nrm
        return jnp.einsum("ijd,ikd->ijk", vdn, vdn, precision=hp)

    angle_loss = smooth_l1_mean(angle(s), angle(t))
    return w_dist * dist_loss + w_angle * angle_loss


if __name__ == "__main__":
    N, D = 16, 32  # batch of 16 logit vectors, hidden dim 32 -> grid of 2 tiles
    key = jax.random.PRNGKey(0)
    ks, kt = jax.random.split(key)
    student = jax.random.normal(ks, (N, D), dtype=jnp.float32)
    teacher = jax.random.normal(kt, (N, D), dtype=jnp.float32)

    loss = jax.block_until_ready(rkd_loss(student, teacher, w_dist=3.0, w_angle=3.0))
    ref = jax.block_until_ready(_rkd_loss_ref(student, teacher, w_dist=3.0, w_angle=3.0))

    # Full-f32 path now (no bf16 operands), so a tight tolerance holds.
    assert jnp.allclose(loss, ref, rtol=2e-3, atol=1e-4), (loss, ref)
    print("KERNEL_OK")
</pallas_src>

<mosaic_0001>
module attributes {stable_mosaic.version = 11 : i64} {
  func.func @_rkd_kernel(%arg0: i32, %arg1: memref<2xf32, #tpu.memory_space<smem>>, %arg2: memref<16x128xf32, #tpu.memory_space<vmem>>, %arg3: memref<16x128xf32, #tpu.memory_space<vmem>>, %arg4: memref<1x1x1xf32, #tpu.memory_space<vmem>>) attributes {dimension_semantics = [#tpu.dimension_semantics<parallel>], iteration_bounds = array<i64: 2>, scalar_prefetch = 0 : i64, scratch_operands = 0 : i64, tpu.core_type = #tpu.core_type<tc>, window_params = [{transform_indices = @transform_0, window_bounds = array<i64: 2>}, {pipeline_mode = #tpu.pipeline_mode<synchronous>, transform_indices = @transform_1, window_bounds = array<i64: 16, 128>}, {pipeline_mode = #tpu.pipeline_mode<synchronous>, transform_indices = @transform_2, window_bounds = array<i64: 16, 128>}, {transform_indices = @transform_3, window_bounds = array<i64: 1, 1, 1>}]} {
    %c8_i32 = arith.constant 8 : i32
    %0 = arith.muli %arg0, %c8_i32 : i32
    %1 = tpu.assume_multiple %0, 8 : i32
    %c0 = arith.constant 0 : index
    %c0_0 = arith.constant 0 : index
    %2 = vector.load %arg2[%c0, %c0_0] : memref<16x128xf32, #tpu.memory_space<vmem>>, vector<16x128xf32>
    %c0_1 = arith.constant 0 : index
    %c0_2 = arith.constant 0 : index
    %3 = vector.load %arg3[%c0_1, %c0_2] : memref<16x128xf32, #tpu.memory_space<vmem>>, vector<16x128xf32>
    %cst = arith.constant 1.000000e+00 : f32
    %4 = vector.broadcast %cst : f32 to vector<1x128xf32>
    %cst_3 = arith.constant dense<0.000000e+00> : vector<16x16xf32>
    %5 = tpu.matmul %2, %2, %cst_3 {dimension_numbers = #tpu.dot_dimension_numbers<[1], [1], [0], [0], [0, 0, 1, 0], [], []>} : vector<16x128xf32>, vector<16x128xf32>, vector<16x16xf32> -> vector<16x16xf32>
    %6 = arith.mulf %2, %2 : vector<16x128xf32>
    %cst_4 = arith.constant dense<0.000000e+00> : vector<1x16xf32>
    %7 = tpu.matmul %4, %6, %cst_4 {dimension_numbers = #tpu.dot_dimension_numbers<[1], [1], [0], [0], [0, 0, 1, 0], [], []>} : vector<1x128xf32>, vector<16x128xf32>, vector<1x16xf32> -> vector<1x16xf32>
    %cst_5 = arith.constant dense<0.000000e+00> : vector<16x16xf32>
    %8 = tpu.matmul %3, %3, %cst_5 {dimension_numbers = #tpu.dot_dimension_numbers<[1], [1], [0], [0], [0, 0, 1, 0], [], []>} : vector<16x128xf32>, vector<16x128xf32>, vector<16x16xf32> -> vector<16x16xf32>
    %9 = arith.mulf %3, %3 : vector<16x128xf32>
    %cst_6 = arith.constant dense<0.000000e+00> : vector<1x16xf32>
    %10 = tpu.matmul %4, %9, %cst_6 {dimension_numbers = #tpu.dot_dimension_numbers<[1], [1], [0], [0], [0, 0, 1, 0], [], []>} : vector<1x128xf32>, vector<16x128xf32>, vector<1x16xf32> -> vector<1x16xf32>
    %11 = tpu.iota {dimensions = array<i32: 1>} : vector<8x16xi32>
    %12 = tpu.iota {dimensions = array<i32: 0>} : vector<8x16xi32>
    %13 = vector.broadcast %1 : i32 to vector<8x16xi32>
    %14 = arith.addi %12, %13 : vector<8x16xi32>
    %15 = arith.cmpi eq, %11, %14 : vector<8x16xi32>
    %16 = arith.index_cast %1 : i32 to index
    %c0_7 = arith.constant 0 : index
    %17 = vector.load %arg2[%16, %c0_7] : memref<16x128xf32, #tpu.memory_space<vmem>>, vector<8x128xf32>
    %cst_8 = arith.constant dense<0.000000e+00> : vector<8x16xf32>
    %18 = tpu.matmul %17, %2, %cst_8 {dimension_numbers = #tpu.dot_dimension_numbers<[1], [1], [0], [0], [0, 0, 1, 0], [], []>} : vector<8x128xf32>, vector<16x128xf32>, vector<8x16xf32> -> vector<8x16xf32>
    %19 = arith.mulf %17, %17 : vector<8x128xf32>
    %cst_9 = arith.constant dense<0.000000e+00> : vector<8xf32>
    %20 = vector.multi_reduction <add>, %19, %cst_9 [1] : vector<8x128xf32> to vector<8xf32>
    %21 = vector.shape_cast %20 : vector<8xf32> to vector<8x1xf32>
    %22 = vector.broadcast %21 : vector<8x1xf32> to vector<8x16xf32>
    %23 = vector.broadcast %7 : vector<1x16xf32> to vector<8x16xf32>
    %24 = arith.addf %22, %23 : vector<8x16xf32>
    %cst_10 = arith.constant 2.000000e+00 : f32
    %25 = vector.broadcast %cst_10 : f32 to vector<8x16xf32>
    %26 = arith.mulf %25, %18 : vector<8x16xf32>
    %27 = arith.subf %24, %26 : vector<8x16xf32>
    %cst_11 = arith.constant 0.000000e+00 : f32
    %28 = vector.broadcast %cst_11 : f32 to vector<8x16xf32>
    %29 = arith.maximumf %27, %28 : vector<8x16xf32>
    %cst_12 = arith.constant 1.000000e-24 : f32
    %30 = vector.broadcast %cst_12 : f32 to vector<8x16xf32>
    %31 = arith.maximumf %29, %30 : vector<8x16xf32>
    %32 = math.rsqrt %31 : vector<8x16xf32>
    %cst_13 = arith.constant 0.000000e+00 : f32
    %33 = vector.broadcast %cst_13 : f32 to vector<8x16xf32>
    %34 = arith.select %15, %33, %32 : vector<8x16xi1>, vector<8x16xf32>
    %35 = vector.shape_cast %5 : vector<16x16xf32> to vector<1x16x16xf32>
    %36 = vector.shape_cast %18 : vector<8x16xf32> to vector<8x1x16xf32>
    %37 = vector.broadcast %35 : vector<1x16x16xf32> to vector<8x16x16xf32>
    %38 = vector.broadcast %36 : vector<8x1x16xf32> to vector<8x16x16xf32>
    %39 = arith.subf %37, %38 : vector<8x16x16xf32>
    %40 = vector.shape_cast %18 : vector<8x16xf32> to vector<8x16x1xf32>
    %41 = vector.broadcast %40 : vector<8x16x1xf32> to vector<8x16x16xf32>
    %42 = arith.subf %39, %41 : vector<8x16x16xf32>
    %43 = vector.shape_cast %21 : vector<8x1xf32> to vector<8x1x1xf32>
    %44 = vector.broadcast %43 : vector<8x1x1xf32> to vector<8x16x16xf32>
    %45 = arith.addf %42, %44 : vector<8x16x16xf32>
    %46 = vector.shape_cast %34 : vector<8x16xf32> to vector<8x16x1xf32>
    %47 = vector.shape_cast %34 : vector<8x16xf32> to vector<8x1x16xf32>
    %48 = vector.broadcast %46 : vector<8x16x1xf32> to vector<8x16x16xf32>
    %49 = vector.broadcast %47 : vector<8x1x16xf32> to vector<8x16x16xf32>
    %50 = arith.mulf %48, %49 : vector<8x16x16xf32>
    %51 = arith.mulf %45, %50 : vector<8x16x16xf32>
    %52 = arith.index_cast %1 : i32 to index
    %c0_14 = arith.constant 0 : index
    %53 = vector.load %arg3[%52, %c0_14] : memref<16x128xf32, #tpu.memory_space<vmem>>, vector<8x128xf32>
    %cst_15 = arith.constant dense<0.000000e+00> : vector<8x16xf32>
    %54 = tpu.matmul %53, %3, %cst_15 {dimension_numbers = #tpu.dot_dimension_numbers<[1], [1], [0], [0], [0, 0, 1, 0], [], []>} : vector<8x128xf32>, vector<16x128xf32>, vector<8x16xf32> -> vector<8x16xf32>
    %55 = arith.mulf %53, %53 : vector<8x128xf32>
    %cst_16 = arith.constant dense<0.000000e+00> : vector<8xf32>
    %56 = vector.multi_reduction <add>, %55, %cst_16 [1] : vector<8x128xf32> to vector<8xf32>
    %57 = vector.shape_cast %56 : vector<8xf32> to vector<8x1xf32>
    %58 = vector.broadcast %57 : vector<8x1xf32> to vector<8x16xf32>
    %59 = vector.broadcast %10 : vector<1x16xf32> to vector<8x16xf32>
    %60 = arith.addf %58, %59 : vector<8x16xf32>
    %cst_17 = arith.constant 2.000000e+00 : f32
    %61 = vector.broadcast %cst_17 : f32 to vector<8x16xf32>
    %62 = arith.mulf %61, %54 : vector<8x16xf32>
    %63 = arith.subf %60, %62 : vector<8x16xf32>
    %cst_18 = arith.constant 0.000000e+00 : f32
    %64 = vector.broadcast %cst_18 : f32 to vector<8x16xf32>
    %65 = arith.maximumf %63, %64 : vector<8x16xf32>
    %cst_19 = arith.constant 1.000000e-24 : f32
    %66 = vector.broadcast %cst_19 : f32 to vector<8x16xf32>
    %67 = arith.maximumf %65, %66 : vector<8x16xf32>
    %68 = math.rsqrt %67 : vector<8x16xf32>
    %cst_20 = arith.constant 0.000000e+00 : f32
    %69 = vector.broadcast %cst_20 : f32 to vector<8x16xf32>
    %70 = arith.select %15, %69, %68 : vector<8x16xi1>, vector<8x16xf32>
    %71 = vector.shape_cast %8 : vector<16x16xf32> to vector<1x16x16xf32>
    %72 = vector.shape_cast %54 : vector<8x16xf32> to vector<8x1x16xf32>
    %73 = vector.broadcast %71 : vector<1x16x16xf32> to vector<8x16x16xf32>
    %74 = vector.broadcast %72 : vector<8x1x16xf32> to vector<8x16x16xf32>
    %75 = arith.subf %73, %74 : vector<8x16x16xf32>
    %76 = vector.shape_cast %54 : vector<8x16xf32> to vector<8x16x1xf32>
    %77 = vector.broadcast %76 : vector<8x16x1xf32> to vector<8x16x16xf32>
    %78 = arith.subf %75, %77 : vector<8x16x16xf32>
    %79 = vector.shape_cast %57 : vector<8x1xf32> to vector<8x1x1xf32>
    %80 = vector.broadcast %79 : vector<8x1x1xf32> to vector<8x16x16xf32>
    %81 = arith.addf %78, %80 : vector<8x16x16xf32>
    %82 = vector.shape_cast %70 : vector<8x16xf32> to vector<8x16x1xf32>
    %83 = vector.shape_cast %70 : vector<8x16xf32> to vector<8x1x16xf32>
    %84 = vector.broadcast %82 : vector<8x16x1xf32> to vector<8x16x16xf32>
    %85 = vector.broadcast %83 : vector<8x1x16xf32> to vector<8x16x16xf32>
    %86 = arith.mulf %84, %85 : vector<8x16x16xf32>
    %87 = arith.mulf %81, %86 : vector<8x16x16xf32>
    %88 = arith.subf %51, %87 : vector<8x16x16xf32>
    %89 = math.absf %88 : vector<8x16x16xf32>
    %cst_21 = arith.constant 1.000000e+00 : f32
    %90 = vector.broadcast %cst_21 : f32 to vector<8x16x16xf32>
    %91 = arith.minimumf %89, %90 : vector<8x16x16xf32>
    %cst_22 = arith.constant 5.000000e-01 : f32
    %92 = vector.broadcast %cst_22 : f32 to vector<8x16x16xf32>
    %93 = arith.mulf %92, %91 : vector<8x16x16xf32>
    %94 = arith.subf %89, %93 : vector<8x16x16xf32>
    %95 = arith.mulf %91, %94 : vector<8x16x16xf32>
    %cst_23 = arith.constant dense<0.000000e+00> : vector<16x16xf32>
    %96 = vector.multi_reduction <add>, %95, %cst_23 [0] : vector<8x16x16xf32> to vector<16x16xf32>
    %cst_24 = arith.constant dense<0.000000e+00> : vector<16xf32>
    %97 = vector.multi_reduction <add>, %96, %cst_24 [1] : vector<16x16xf32> to vector<16xf32>
    %98 = vector.shape_cast %97 : vector<16xf32> to vector<16x1xf32>
    %cst_25 = arith.constant dense<0.000000e+00> : vector<1xf32>
    %99 = vector.multi_reduction <add>, %98, %cst_25 [0] : vector<16x1xf32> to vector<1xf32>
    %100 = vector.shape_cast %99 : vector<1xf32> to vector<1x1xf32>
    %c0_26 = arith.constant 0 : index
    %101 = memref.load %arg1[%c0_26] : memref<2xf32, #tpu.memory_space<smem>>
    %c1 = arith.constant 1 : index
    %102 = memref.load %arg1[%c1] : memref<2xf32, #tpu.memory_space<smem>>
    %cst_27 = arith.constant 4.096000e+03 : f32
    %103 = arith.divf %102, %cst_27 : f32
    %104 = vector.broadcast %103 : f32 to vector<1x1xf32>
    %105 = arith.mulf %104, %100 : vector<1x1xf32>
    %106 = vector.shape_cast %105 : vector<1x1xf32> to vector<1x1x1xf32>
    %c0_28 = arith.constant 0 : index
    %c0_29 = arith.constant 0 : index
    %c0_30 = arith.constant 0 : index
    %107 = vector.load %arg4[%c0_28, %c0_29, %c0_30] : memref<1x1x1xf32, #tpu.memory_space<vmem>>, vector<1x1x1xf32>
    tpu.vector_store %arg4[%c0_28, %c0_29, %c0_30], %106 {strides = array<i32>} : memref<1x1x1xf32, #tpu.memory_space<vmem>>, vector<1x1x1xf32>,
    %c0_i32 = arith.constant 0 : i32
    %108 = arith.cmpi eq, %arg0, %c0_i32 : i32
    %109 = arith.extui %108 : i1 to i32
    %c0_i32_31 = arith.constant 0 : i32
    %110 = arith.cmpi ne, %109, %c0_i32_31 : i32
    scf.if %110 {
      %111 = tpu.iota {dimensions = array<i32: 0>} : vector<16x16xi32>
      %112 = tpu.iota {dimensions = array<i32: 1>} : vector<16x16xi32>
      %113 = arith.cmpi eq, %111, %112 : vector<16x16xi32>
      %114 = arith.mulf %2, %2 : vector<16x128xf32>
      %cst_32 = arith.constant dense<0.000000e+00> : vector<16xf32>
      %115 = vector.multi_reduction <add>, %114, %cst_32 [1] : vector<16x128xf32> to vector<16xf32>
      %116 = vector.shape_cast %115 : vector<16xf32> to vector<16x1xf32>
      %117 = vector.broadcast %116 : vector<16x1xf32> to vector<16x16xf32>
      %118 = vector.broadcast %7 : vector<1x16xf32> to vector<16x16xf32>
      %119 = arith.addf %117, %118 : vector<16x16xf32>
      %cst_33 = arith.constant 2.000000e+00 : f32
      %120 = vector.broadcast %cst_33 : f32 to vector<16x16xf32>
      %121 = arith.mulf %120, %5 : vector<16x16xf32>
      %122 = arith.subf %119, %121 : vector<16x16xf32>
      %cst_34 = arith.constant 9.99999996E-13 : f32
      %123 = vector.broadcast %cst_34 : f32 to vector<16x16xf32>
      %124 = arith.maximumf %122, %123 : vector<16x16xf32>
      %125 = math.sqrt %124 : vector<16x16xf32>
      %cst_35 = arith.constant 0.000000e+00 : f32
      %126 = vector.broadcast %cst_35 : f32 to vector<16x16xf32>
      %127 = arith.select %113, %126, %125 : vector<16x16xi1>, vector<16x16xf32>
      %cst_36 = arith.constant dense<0.000000e+00> : vector<16xf32>
      %128 = vector.multi_reduction <add>, %127, %cst_36 [1] : vector<16x16xf32> to vector<16xf32>
      %129 = vector.shape_cast %128 : vector<16xf32> to vector<16x1xf32>
      %cst_37 = arith.constant dense<0.000000e+00> : vector<1xf32>
      %130 = vector.multi_reduction <add>, %129, %cst_37 [0] : vector<16x1xf32> to vector<1xf32>
      %131 = vector.shape_cast %130 : vector<1xf32> to vector<1x1xf32>
      %cst_38 = arith.constant 2.400000e+02 : f32
      %132 = vector.broadcast %cst_38 : f32 to vector<1x1xf32>
      %133 = arith.divf %132, %131 : vector<1x1xf32>
      %134 = vector.broadcast %133 : vector<1x1xf32> to vector<16x16xf32>
      %135 = arith.mulf %127, %134 : vector<16x16xf32>
      %136 = arith.mulf %3, %3 : vector<16x128xf32>
      %cst_39 = arith.constant dense<0.000000e+00> : vector<16xf32>
      %137 = vector.multi_reduction <add>, %136, %cst_39 [1] : vector<16x128xf32> to vector<16xf32>
      %138 = vector.shape_cast %137 : vector<16xf32> to vector<16x1xf32>
      %139 = vector.broadcast %138 : vector<16x1xf32> to vector<16x16xf32>
      %140 = vector.broadcast %10 : vector<1x16xf32> to vector<16x16xf32>
      %141 = arith.addf %139, %140 : vector<16x16xf32>
      %cst_40 = arith.constant 2.000000e+00 : f32
      %142 = vector.broadcast %cst_40 : f32 to vector<16x16xf32>
      %143 = arith.mulf %142, %8 : vector<16x16xf32>
      %144 = arith.subf %141, %143 : vector<16x16xf32>
      %cst_41 = arith.constant 9.99999996E-13 : f32
      %145 = vector.broadcast %cst_41 : f32 to vector<16x16xf32>
      %146 = arith.maximumf %144, %145 : vector<16x16xf32>
      %147 = math.sqrt %146 : vector<16x16xf32>
      %cst_42 = arith.constant 0.000000e+00 : f32
      %148 = vector.broadcast %cst_42 : f32 to vector<16x16xf32>
      %149 = arith.select %113, %148, %147 : vector<16x16xi1>, vector<16x16xf32>
      %cst_43 = arith.constant dense<0.000000e+00> : vector<16xf32>
      %150 = vector.multi_reduction <add>, %149, %cst_43 [1] : vector<16x16xf32> to vector<16xf32>
      %151 = vector.shape_cast %150 : vector<16xf32> to vector<16x1xf32>
      %cst_44 = arith.constant dense<0.000000e+00> : vector<1xf32>
      %152 = vector.multi_reduction <add>, %151, %cst_44 [0] : vector<16x1xf32> to vector<1xf32>
      %153 = vector.shape_cast %152 : vector<1xf32> to vector<1x1xf32>
      %cst_45 = arith.constant 2.400000e+02 : f32
      %154 = vector.broadcast %cst_45 : f32 to vector<1x1xf32>
      %155 = arith.divf %154, %153 : vector<1x1xf32>
      %156 = vector.broadcast %155 : vector<1x1xf32> to vector<16x16xf32>
      %157 = arith.mulf %149, %156 : vector<16x16xf32>
      %158 = arith.subf %135, %157 : vector<16x16xf32>
      %159 = math.absf %158 : vector<16x16xf32>
      %cst_46 = arith.constant 1.000000e+00 : f32
      %160 = vector.broadcast %cst_46 : f32 to vector<16x16xf32>
      %161 = arith.minimumf %159, %160 : vector<16x16xf32>
      %cst_47 = arith.constant 5.000000e-01 : f32
      %162 = vector.broadcast %cst_47 : f32 to vector<16x16xf32>
      %163 = arith.mulf %162, %161 : vector<16x16xf32>
      %164 = arith.subf %159, %163 : vector<16x16xf32>
      %165 = arith.mulf %161, %164 : vector<16x16xf32>
      %cst_48 = arith.constant dense<0.000000e+00> : vector<16xf32>
      %166 = vector.multi_reduction <add>, %165, %cst_48 [1] : vector<16x16xf32> to vector<16xf32>
      %167 = vector.shape_cast %166 : vector<16xf32> to vector<16x1xf32>
      %cst_49 = arith.constant dense<0.000000e+00> : vector<1xf32>
      %168 = vector.multi_reduction <add>, %167, %cst_49 [0] : vector<16x1xf32> to vector<1xf32>
      %169 = vector.shape_cast %168 : vector<1xf32> to vector<1x1xf32>
      %c0_50 = arith.constant 0 : index
      %c0_51 = arith.constant 0 : index
      %c0_52 = arith.constant 0 : index
      %170 = vector.load %arg4[%c0_50, %c0_51, %c0_52] : memref<1x1x1xf32, #tpu.memory_space<vmem>>, vector<1x1x1xf32>
      %cst_53 = arith.constant 2.560000e+02 : f32
      %171 = arith.divf %101, %cst_53 : f32
      %172 = vector.broadcast %171 : f32 to vector<1x1xf32>
      %173 = arith.mulf %172, %169 : vector<1x1xf32>
      %174 = vector.shape_cast %173 : vector<1x1xf32> to vector<1x1x1xf32>
      %175 = arith.addf %170, %174 : vector<1x1x1xf32>
      %c0_54 = arith.constant 0 : index
      %c0_55 = arith.constant 0 : index
      %c0_56 = arith.constant 0 : index
      %176 = vector.load %arg4[%c0_54, %c0_55, %c0_56] : memref<1x1x1xf32, #tpu.memory_space<vmem>>, vector<1x1x1xf32>
      tpu.vector_store %arg4[%c0_54, %c0_55, %c0_56], %175 {strides = array<i32>} : memref<1x1x1xf32, #tpu.memory_space<vmem>>, vector<1x1x1xf32>,
    } else {
    }
    return
  }
  func.func @transform_0(%arg0: i32) -> i32 {
    %c0_i32 = arith.constant 0 : i32
    %c0_i32_0 = arith.constant 0 : i32
    return %c0_i32 : i32
  }
  func.func @transform_1(%arg0: i32) -> (i32, i32) {
    %c0_i32 = arith.constant 0 : i32
    %c0_i32_0 = arith.constant 0 : i32
    %c0_i32_1 = arith.constant 0 : i32
    return %c0_i32, %c0_i32_0 : i32, i32
  }
  func.func @transform_2(%arg0: i32) -> (i32, i32) {
    %c0_i32 = arith.constant 0 : i32
    %c0_i32_0 = arith.constant 0 : i32
    %c0_i32_1 = arith.constant 0 : i32
    return %c0_i32, %c0_i32_0 : i32, i32
  }
  func.func @transform_3(%arg0: i32) -> (i32, i32, i32) {
    %c0_i32 = arith.constant 0 : i32
    %c0_i32_0 = arith.constant 0 : i32
    %c0_i32_1 = arith.constant 0 : i32
    return %arg0, %c0_i32, %c0_i32_0 : i32, i32, i32
  }
}

</mosaic_0001>

<llo_original>
// kernel: tpu_custom_call.1
$region0: #{tpu_custom_call.1}
  #allocation0 [shape = 'u32[]', space=smem, size = 0x4, offset = 0x4, fixed_abs, tag = 'smem constant byte address 0x4 - core index']
  #allocation1 [shape = 'u32[144,128]{1,0:T(1,128)}', space=vmem, size = 0x12000, scoped, tag = 'internal scratch']
  %s0 = inlined_call_operand.hbm [shape: f32[2], index: 0, kind: input, shape index: {}]
  %s1 = inlined_call_operand.hbm [shape: f32[16,128], index: 1, kind: input, shape index: {}]
  %s2 = inlined_call_operand.hbm [shape: f32[16,128], index: 2, kind: input, shape index: {}]
  %s3 = inlined_call_operand.vmem [shape: f32[2,1,1], index: 3, kind: output, shape index: {}]
  %s4 = sld [smem:[#allocation0]]
  $region61: #{tpu_custom_call.1} parent=0
    _
  %s6 = ssub.s32 1, %s4
  %s7 = scalar_select 0, %s6, %s4
  $region1: #{tpu_custom_call.1} parent=0
    #allocation2 [shape = 'u8[512]{0}', space=smem, size = 0x200, scoped, tag = 'input window, operand 0, single buffered']
    #allocation3 [shape = 's32[2]{0}', space=sflag, size = 0x8, scoped, tag = 'scoped memory for tpu_custom_call.1']
    #allocation4 [shape = 's32[2]{0}', space=sflag, size = 0x8, scoped, tag = 'scoped memory for tpu_custom_call.1']
    #allocation5 [shape = 'u8[8192]{0}', space=vmem, size = 0x2000, scoped, tag = 'input window, operand 1, single buffered']
    #allocation6 [shape = 'u8[8192]{0}', space=vmem, size = 0x2000, scoped, tag = 'input window, operand 2, single buffered']
    #allocation7 [shape = 's32[1]{0}', space=sflag, size = 0x4, scoped, tag = 'scoped memory for tpu_custom_call.1']
    %8 = vsyncpa [#allocation4], 0
    %9 = vsyncpa [#allocation3], 0
    %10 = vsyncpa [#allocation7], 0
    loop: start=0, step=1, limit=4
    $region2: #{tpu_custom_call.1} parent=1 // loop_pre_header
      _
    $region3: #{tpu_custom_call.1} parent=1 // loop_header
      %s12 = sphi 0, %s16
      %p13 = scmp.ge.s32.totalorder %s12, 4
      %s20 = sphi 0, %s20
      %s22 = sphi 0, %s20
      %s23 = sphi 0, %s22
      %s37 = sphi 0, %s23
      %s41 = sphi 0, %s41
      %s43 = sphi 0, %s41
      %s44 = sphi 0, %s43
      %s58 = sphi 0, %s44
      %s62 = sphi 0, %s62
      %s64 = sphi 0, %s62
      %s65 = sphi 0, %s64
      %s79 = sphi 0, %s65
      %s85 = sphi 0, %s87
      %s88 = sphi 0, %s85
      %s89 = sphi 0, %s88
      %s105 = sphi 0, %s89
    $region4: #{tpu_custom_call.1} parent=1 // loop_header_branch
      %15 = sbr.rel (%p13) target = $region8
    $region5: #{tpu_custom_call.1} parent=1 // loop_body
      %s17 = ssub.s32 %s12, 1
      %s18 = ssub.s32 %s12, 2
      %s19 = sadd.s32 %s12, 1
      %s21 = sadd.s32 %s20, 1
      %p24 = scmp.eq.s32.totalorder %s12, 1
      %p25 = scmp.ne.s32.totalorder %s20, %s22
      %p26 = scmp.eq.s32.totalorder %s12, 0
      %p27 = por %p25, %p26
      %p28 = scmp.ne.s32.totalorder %s20, %s22
      %p29 = scmp.eq.s32.totalorder %s17, 1
      %p30 = por %p28, %p29
      %p31 = scmp.ne.s32.totalorder %s22, %s23
      %p32 = scmp.eq.s32.totalorder %s17, 0
      %p33 = por %p31, %p32
      %p34 = scmp.ne.s32.totalorder %s22, %s23
      %p35 = scmp.eq.s32.totalorder %s18, 1
      %p36 = por %p34, %p35
      %p38 = scmp.ne.s32.totalorder %s23, %s37
      %p39 = scmp.eq.s32.totalorder %s18, 0
      %p40 = por %p38, %p39
      %s42 = sadd.s32 %s41, 1
      %p45 = scmp.eq.s32.totalorder %s12, 1
      %p46 = scmp.ne.s32.totalorder %s41, %s43
      %p47 = scmp.eq.s32.totalorder %s12, 0
      %p48 = por %p46, %p47
      %p49 = scmp.ne.s32.totalorder %s41, %s43
      %p50 = scmp.eq.s32.totalorder %s17, 1
      %p51 = por %p49, %p50
      %p52 = scmp.ne.s32.totalorder %s43, %s44
      %p53 = scmp.eq.s32.totalorder %s17, 0
      %p54 = por %p52, %p53
      %p55 = scmp.ne.s32.totalorder %s43, %s44
      %p56 = scmp.eq.s32.totalorder %s18, 1
      %p57 = por %p55, %p56
      %p59 = scmp.ne.s32.totalorder %s44, %s58
      %p60 = scmp.eq.s32.totalorder %s18, 0
      %p61 = por %p59, %p60
      %s63 = sadd.s32 %s62, 1
      %p66 = scmp.eq.s32.totalorder %s12, 1
      %p67 = scmp.ne.s32.totalorder %s62, %s64
      %p68 = scmp.eq.s32.totalorder %s12, 0
      %p69 = por %p67, %p68
      %p70 = scmp.ne.s32.totalorder %s62, %s64
      %p71 = scmp.eq.s32.totalorder %s17, 1
      %p72 = por %p70, %p71
      %p73 = scmp.ne.s32.totalorder %s64, %s65
      %p74 = scmp.eq.s32.totalorder %s17, 0
      %p75 = por %p73, %p74
      %p76 = scmp.ne.s32.totalorder %s64, %s65
      %p77 = scmp.eq.s32.totalorder %s18, 1
      %p78 = por %p76, %p77
      %p80 = scmp.ne.s32.totalorder %s65, %s79
      %p81 = scmp.eq.s32.totalorder %s18, 0
      %p82 = por %p80, %p81
      %s83 = ssub.s32 %s12, %s19
      %p84 = scmp.eq.s32.totalorder %s83, 0
      %s86 = sadd.s32 %s85, 1
      %s87 = scalar_select %p84, %s85, %s86
      %p90 = pneg %p84
      %p91 = scmp.eq.s32.totalorder %s12, 1
      %p92 = por %p90, %p91
      %p93 = scmp.ne.s32.totalorder %s85, %s88
      %p94 = scmp.eq.s32.totalorder %s12, 0
      %p95 = por %p93, %p94
      %p96 = scmp.ne.s32.totalorder %s85, %s88
      %p97 = scmp.eq.s32.totalorder %s17, 1
      %p98 = por %p96, %p97
      %p99 = scmp.ne.s32.totalorder %s88, %s89
      %p100 = scmp.eq.s32.totalorder %s17, 0
      %p101 = por %p99, %p100
      %p102 = scmp.ne.s32.totalorder %s88, %s89
      %p103 = scmp.eq.s32.totalorder %s18, 1
      %p104 = por %p102, %p103
      %p106 = scmp.ne.s32.totalorder %s89, %s105
      %p107 = scmp.eq.s32.totalorder %s18, 0
      %p108 = por %p106, %p107
      %p109 = scmp.le.s32.totalorder 1, %s12
      %p110 = scmp.lt.s32.totalorder %s12, 3
      %p111 = pnand %p109, %p110
      %p112 = pneg %p111
      // Predicated region
      $region9: #{tpu_custom_call.1} parent=5 // pred_check
        _
      $region10: #{tpu_custom_call.1} parent=5 // pred_check_branch
        %114 = sbr.rel (%p111) target = $region12
      $region11: #{tpu_custom_call.1} parent=5 // pred_region
        %s115 = ssub.s32 %s12, 1
        // Predicated region
        $region13: #{tpu_custom_call.1} parent=11 // pred_check
          %p116 = pneg %p33
        $region14: #{tpu_custom_call.1} parent=11 // pred_check_branch
          %118 = sbr.rel (%p116) target = $region16
        $region15: #{tpu_custom_call.1} parent=11 // pred_region
          %s120 = ssub.s32 16, 16
          %121 = vsyncadd [#allocation4], %s120
          %124 = dma.hbm_to_smem %s0, 16, [#allocation2], [#allocation4]
        $region16: #{tpu_custom_call.1} parent=11 // pred_fallthru
          _
        // Predicated region
        $region17: #{tpu_custom_call.1} parent=11 // pred_check
          %p125 = pneg %p54
        $region18: #{tpu_custom_call.1} parent=11 // pred_check_branch
          %127 = sbr.rel (%p125) target = $region20
        $region19: #{tpu_custom_call.1} parent=11 // pred_region
          %s129 = ssub.s32 256, 256
          %130 = vsyncadd [#allocation3], %s129
          %s131 = sshll.u32 [#allocation5], 4
          %s132 = int_to_ptr.vmem [resolvable:$true] %s131
          %137 = dma.hbm_to_vmem [thread:$0]  %s1, 256, %s132, [#allocation3], 128, 128, 8
        $region20: #{tpu_custom_call.1} parent=11 // pred_fallthru
          _
        // Predicated region
        $region21: #{tpu_custom_call.1} parent=11 // pred_check
          %p138 = pneg %p75
        $region22: #{tpu_custom_call.1} parent=11 // pred_check_branch
          %140 = sbr.rel (%p138) target = $region24
        $region23: #{tpu_custom_call.1} parent=11 // pred_region
          %s142 = ssub.s32 256, 256
          %143 = vsyncadd [#allocation7], %s142
          %s144 = sshll.u32 [#allocation6], 4
          %s145 = int_to_ptr.vmem [resolvable:$true] %s144
          %150 = dma.hbm_to_vmem [thread:$0]  %s2, 256, %s145, [#allocation7], 128, 128, 8
        $region24: #{tpu_custom_call.1} parent=11 // pred_fallthru
          _
      $region12: #{tpu_custom_call.1} parent=5 // pred_fallthru
        _
      %p151 = scmp.lt.s32.totalorder %s12, 2
      // Predicated region
      $region25: #{tpu_custom_call.1} parent=5 // pred_check
        %p152 = pneg %p151
      $region26: #{tpu_custom_call.1} parent=5 // pred_check_branch
        %154 = sbr.rel (%p152) target = $region28
      $region27: #{tpu_custom_call.1} parent=5 // pred_region
        _
      $region28: #{tpu_custom_call.1} parent=5 // pred_fallthru
        _
      %p155 = scmp.le.s32.totalorder 1, %s12
      %p156 = scmp.lt.s32.totalorder %s12, 3
      %p157 = pnand %p155, %p156
      %p158 = pneg %p157
      // Predicated region
      $region29: #{tpu_custom_call.1} parent=5 // pred_check
        _
      $region30: #{tpu_custom_call.1} parent=5 // pred_check_branch
        %160 = sbr.rel (%p157) target = $region32
      $region31: #{tpu_custom_call.1} parent=5 // pred_region
        %s161 = ssub.s32 %s12, 1
        // Predicated region
        $region33: #{tpu_custom_call.1} parent=31 // pred_check
          %p162 = pneg %p33
        $region34: #{tpu_custom_call.1} parent=31 // pred_check_branch
          %164 = sbr.rel (%p162) target = $region36
        $region35: #{tpu_custom_call.1} parent=31 // pred_region
          %165 = dma.done [#allocation4], 16
        $region36: #{tpu_custom_call.1} parent=31 // pred_fallthru
          _
        // Predicated region
        $region37: #{tpu_custom_call.1} parent=31 // pred_check
          %p166 = pneg %p54
        $region38: #{tpu_custom_call.1} parent=31 // pred_check_branch
          %168 = sbr.rel (%p166) target = $region40
        $region39: #{tpu_custom_call.1} parent=31 // pred_region
          %169 = dma.done [#allocation3], 256
        $region40: #{tpu_custom_call.1} parent=31 // pred_fallthru
          _
        // Predicated region
        $region41: #{tpu_custom_call.1} parent=31 // pred_check
          %p170 = pneg %p75
        $region42: #{tpu_custom_call.1} parent=31 // pred_check_branch
          %172 = sbr.rel (%p170) target = $region44
        $region43: #{tpu_custom_call.1} parent=31 // pred_region
          %173 = dma.done [#allocation7], 256
        $region44: #{tpu_custom_call.1} parent=31 // pred_fallthru
          _
        %174 = sfence
        %p175 = pneg %p33
        %p176 = pneg %p30
        %p177 = pneg %p54
        %p178 = pneg %p51
        %p179 = pneg %p75
        %p180 = pneg %p72
        %p181 = pneg %p101
        %p182 = pneg %p98
        %p183 = scmp.lt.s32.totalorder %s17, 1
        %s184 = scalar_select %p183, %s17, 1
        %s185 = scalar_lea.vmem %s3, %s184
        %p186 = scmp.lt.s32.totalorder %s17, 1
        %s187 = scalar_select %p186, %s17, 1
        %s188 = scalar_lea.vmem %s3, %s187
        %s189 = smul.u32 %s17, 8
        %v190 = vld [vmem:[#allocation5] sm:$0xff]
        %v191 = vld [vmem:[#allocation5 + $0x8] sm:$0xff]
        %v192 = vld [vmem:[#allocation6] sm:$0xff]
        %v193 = vld [vmem:[#allocation6 + $0x8] sm:$0xff]
        %194 = vmatprep.subr.mxu0 0.0
        %195 = vmatpush1.xpose.msra.mxu0 %v190
        %196 = vmatprep.subr.mxu0 0.0
        %197 = vmatpush1.xpose.msra.mxu0 %v191
        %198 = vmatprep.subr.mxu0 0.0
        %199 = vmatpush1.xpose.msra.mxu0 0.0
        %200 = vmatprep.subr.mxu0 0.0
        %201 = vmatpush1.xpose.msra.mxu0 0.0
        %202 = vmatprep.subr.mxu0 0.0
        %203 = vmatpush1.xpose.msra.mxu0 0.0
        %204 = vmatprep.subr.mxu0 0.0
        %205 = vmatpush1.xpose.msra.mxu0 0.0
        %206 = vmatprep.subr.mxu0 0.0
        %207 = vmatpush1.xpose.msra.mxu0 0.0
        %208 = vmatprep.subr.mxu0 0.0
        %209 = vmatpush1.xpose.msra.mxu0 0.0
        %210 = vmatprep.subr.mxu0 0.0
        %211 = vmatpush1.xpose.msra.mxu0 0.0
        %212 = vmatprep.subr.mxu0 0.0
        %213 = vmatpush1.xpose.msra.mxu0 0.0
        %214 = vmatprep.subr.mxu0 0.0
        %215 = vmatpush1.xpose.msra.mxu0 0.0
        %216 = vmatprep.subr.mxu0 0.0
        %217 = vmatpush1.xpose.msra.mxu0 0.0
        %218 = vmatprep.subr.mxu0 0.0
        %219 = vmatpush1.xpose.msra.mxu0 0.0
        %220 = vmatprep.subr.mxu0 0.0
        %221 = vmatpush1.xpose.msra.mxu0 0.0
        %222 = vmatprep.subr.mxu0 0.0
        %223 = vmatpush1.xpose.msra.mxu0 0.0
        %224 = vmatprep.subr.mxu0 0.0
        %225 = vmatpush1.xpose.msra.mxu0 0.0
        %226 = vmatprep.subr.mxu0 0.0
        %227 = vmatpush1.xpose.msra.mxu0 0.0
        %228 = vmatprep.subr.mxu0 0.0
        %229 = vmatpush1.xpose.msra.mxu0 0.0
        %230 = vmatprep.subr.mxu0 0.0
        %231 = vmatpush1.xpose.msra.mxu0 0.0
        %232 = vmatprep.subr.mxu0 0.0
        %233 = vmatpush1.xpose.msra.mxu0 0.0
        %234 = vmatprep.subr.mxu0 0.0
        %235 = vmatpush1.xpose.msra.mxu0 0.0
        %236 = vmatprep.subr.mxu0 0.0
        %237 = vmatpush1.xpose.msra.mxu0 0.0
        %238 = vmatprep.subr.mxu0 0.0
        %239 = vmatpush1.xpose.msra.mxu0 0.0
        %240 = vmatprep.subr.mxu0 0.0
        %241 = vmatpush1.xpose.msra.mxu0 0.0
        %242 = vmatprep.subr.mxu0 0.0
        %243 = vmatpush1.xpose.msra.mxu0 0.0
        %244 = vmatprep.subr.mxu0 0.0
        %245 = vmatpush1.xpose.msra.mxu0 0.0
        %246 = vmatprep.subr.mxu0 0.0
        %247 = vmatpush1.xpose.msra.mxu0 0.0
        %248 = vmatprep.subr.mxu0 0.0
        %249 = vmatpush1.xpose.msra.mxu0 0.0
        %250 = vmatprep.subr.mxu0 0.0
        %251 = vmatpush1.xpose.msra.mxu0 0.0
        %252 = vmatprep.subr.mxu0 0.0
        %253 = vmatpush1.xpose.msra.mxu0 0.0
        %254 = vmatprep.subr.mxu0 0.0
        %255 = vmatpush1.xpose.msra.mxu0 0.0
        %256 = vmatprep.subr.mxu0 0.0
        %257 = vmatpush1.xpose.msra.mxu0 0.0
        %258 = vmatprep.mubr.f32.mxu0 0.0
        %259 = vmatmul.mubr.f32.gmra.mrb[0].mxu0 %v190
        %v260 = vpop.f32.mrb[0].mxu0
        %v261 = vadd.f32 0.0, %v260
        %v262 = vpop.f32.mrb[0].mxu0
        %263 = vmatprep.mubr.f32.mxu0 0.0
        %264 = vmatmul.mubr.f32.gmra.mrb[0].mxu0 %v191
        %v265 = vpop.f32.mrb[0].mxu0
        %v266 = vadd.f32 0.0, %v265
        %v267 = vpop.f32.mrb[0].mxu0
        %268 = vdwg.mxu0
        %v269 = vmul.f32 %v190, %v190
        %v270 = vmul.f32 %v191, %v191
        %271 = vmatprep.subr.mxu0 0.0
        %272 = vmatpush1.xpose.msra.mxu0 %v269
        %273 = vmatprep.subr.mxu0 0.0
        %274 = vmatpush1.xpose.msra.mxu0 %v270
        %275 = vmatprep.subr.mxu0 0.0
        %276 = vmatpush1.xpose.msra.mxu0 0.0
        %277 = vmatprep.subr.mxu0 0.0
        %278 = vmatpush1.xpose.msra.mxu0 0.0
        %279 = vmatprep.subr.mxu0 0.0
        %280 = vmatpush1.xpose.msra.mxu0 0.0
        %281 = vmatprep.subr.mxu0 0.0
        %282 = vmatpush1.xpose.msra.mxu0 0.0
        %283 = vmatprep.subr.mxu0 0.0
        %284 = vmatpush1.xpose.msra.mxu0 0.0
        %285 = vmatprep.subr.mxu0 0.0
        %286 = vmatpush1.xpose.msra.mxu0 0.0
        %287 = vmatprep.subr.mxu0 0.0
        %288 = vmatpush1.xpose.msra.mxu0 0.0
        %289 = vmatprep.subr.mxu0 0.0
        %290 = vmatpush1.xpose.msra.mxu0 0.0
        %291 = vmatprep.subr.mxu0 0.0
        %292 = vmatpush1.xpose.msra.mxu0 0.0
        %293 = vmatprep.subr.mxu0 0.0
        %294 = vmatpush1.xpose.msra.mxu0 0.0
        %295 = vmatprep.subr.mxu0 0.0
        %296 = vmatpush1.xpose.msra.mxu0 0.0
        %297 = vmatprep.subr.mxu0 0.0
        %298 = vmatpush1.xpose.msra.mxu0 0.0
        %299 = vmatprep.subr.mxu0 0.0
        %300 = vmatpush1.xpose.msra.mxu0 0.0
        %301 = vmatprep.subr.mxu0 0.0
        %302 = vmatpush1.xpose.msra.mxu0 0.0
        %303 = vmatprep.subr.mxu0 0.0
        %304 = vmatpush1.xpose.msra.mxu0 0.0
        %305 = vmatprep.subr.mxu0 0.0
        %306 = vmatpush1.xpose.msra.mxu0 0.0
        %307 = vmatprep.subr.mxu0 0.0
        %308 = vmatpush1.xpose.msra.mxu0 0.0
        %309 = vmatprep.subr.mxu0 0.0
        %310 = vmatpush1.xpose.msra.mxu0 0.0
        %311 = vmatprep.subr.mxu0 0.0
        %312 = vmatpush1.xpose.msra.mxu0 0.0
        %313 = vmatprep.subr.mxu0 0.0
        %314 = vmatpush1.xpose.msra.mxu0 0.0
        %315 = vmatprep.subr.mxu0 0.0
        %316 = vmatpush1.xpose.msra.mxu0 0.0
        %317 = vmatprep.subr.mxu0 0.0
        %318 = vmatpush1.xpose.msra.mxu0 0.0
        %319 = vmatprep.subr.mxu0 0.0
        %320 = vmatpush1.xpose.msra.mxu0 0.0
        %321 = vmatprep.subr.mxu0 0.0
        %322 = vmatpush1.xpose.msra.mxu0 0.0
        %323 = vmatprep.subr.mxu0 0.0
        %324 = vmatpush1.xpose.msra.mxu0 0.0
        %325 = vmatprep.subr.mxu0 0.0
        %326 = vmatpush1.xpose.msra.mxu0 0.0
        %327 = vmatprep.subr.mxu0 0.0
        %328 = vmatpush1.xpose.msra.mxu0 0.0
        %329 = vmatprep.subr.mxu0 0.0
        %330 = vmatpush1.xpose.msra.mxu0 0.0
        %331 = vmatprep.subr.mxu0 0.0
        %332 = vmatpush1.xpose.msra.mxu0 0.0
        %333 = vmatprep.subr.mxu0 0.0
        %334 = vmatpush1.xpose.msra.mxu0 0.0
        %335 = vmatprep.mubr.f32.mxu0 0.0
        %336 = vmatmul.mubr.f32.gmra.mrb[0].mxu0 1.0
        %v337 = vpop.f32.mrb[0].mxu0
        %v338 = vadd.f32 0.0, %v337
        %v339 = vpop.f32.mrb[0].mxu0
        %340 = vdwg.mxu0
        %341 = vmatprep.subr.mxu0 0.0
        %342 = vmatpush1.xpose.msra.mxu0 %v192
        %343 = vmatprep.subr.mxu0 0.0
        %344 = vmatpush1.xpose.msra.mxu0 %v193
        %345 = vmatprep.subr.mxu0 0.0
        %346 = vmatpush1.xpose.msra.mxu0 0.0
        %347 = vmatprep.subr.mxu0 0.0
        %348 = vmatpush1.xpose.msra.mxu0 0.0
        %349 = vmatprep.subr.mxu0 0.0
        %350 = vmatpush1.xpose.msra.mxu0 0.0
        %351 = vmatprep.subr.mxu0 0.0
        %352 = vmatpush1.xpose.msra.mxu0 0.0
        %353 = vmatprep.subr.mxu0 0.0
        %354 = vmatpush1.xpose.msra.mxu0 0.0
        %355 = vmatprep.subr.mxu0 0.0
        %356 = vmatpush1.xpose.msra.mxu0 0.0
        %357 = vmatprep.subr.mxu0 0.0
        %358 = vmatpush1.xpose.msra.mxu0 0.0
        %359 = vmatprep.subr.mxu0 0.0
        %360 = vmatpush1.xpose.msra.mxu0 0.0
        %361 = vmatprep.subr.mxu0 0.0
        %362 = vmatpush1.xpose.msra.mxu0 0.0
        %363 = vmatprep.subr.mxu0 0.0
        %364 = vmatpush1.xpose.msra.mxu0 0.0
        %365 = vmatprep.subr.mxu0 0.0
        %366 = vmatpush1.xpose.msra.mxu0 0.0
        %367 = vmatprep.subr.mxu0 0.0
        %368 = vmatpush1.xpose.msra.mxu0 0.0
        %369 = vmatprep.subr.mxu0 0.0
        %370 = vmatpush1.xpose.msra.mxu0 0.0
        %371 = vmatprep.subr.mxu0 0.0
        %372 = vmatpush1.xpose.msra.mxu0 0.0
        %373 = vmatprep.subr.mxu0 0.0
        %374 = vmatpush1.xpose.msra.mxu0 0.0
        %375 = vmatprep.subr.mxu0 0.0
        %376 = vmatpush1.xpose.msra.mxu0 0.0
        %377 = vmatprep.subr.mxu0 0.0
        %378 = vmatpush1.xpose.msra.mxu0 0.0
        %379 = vmatprep.subr.mxu0 0.0
        %380 = vmatpush1.xpose.msra.mxu0 0.0
        %381 = vmatprep.subr.mxu0 0.0
        %382 = vmatpush1.xpose.msra.mxu0 0.0
        %383 = vmatprep.subr.mxu0 0.0
        %384 = vmatpush1.xpose.msra.mxu0 0.0
        %385 = vmatprep.subr.mxu0 0.0
        %386 = vmatpush1.xpose.msra.mxu0 0.0
        %387 = vmatprep.subr.mxu0 0.0
        %388 = vmatpush1.xpose.msra.mxu0 0.0
        %389 = vmatprep.subr.mxu0 0.0
        %390 = vmatpush1.xpose.msra.mxu0 0.0
        %391 = vmatprep.subr.mxu0 0.0
        %392 = vmatpush1.xpose.msra.mxu0 0.0
        %393 = vmatprep.subr.mxu0 0.0
        %394 = vmatpush1.xpose.msra.mxu0 0.0
        %395 = vmatprep.subr.mxu0 0.0
        %396 = vmatpush1.xpose.msra.mxu0 0.0
        %397 = vmatprep.subr.mxu0 0.0
        %398 = vmatpush1.xpose.msra.mxu0 0.0
        %399 = vmatprep.subr.mxu0 0.0
        %400 = vmatpush1.xpose.msra.mxu0 0.0
        %401 = vmatprep.subr.mxu0 0.0
        %402 = vmatpush1.xpose.msra.mxu0 0.0
        %403 = vmatprep.subr.mxu0 0.0
        %404 = vmatpush1.xpose.msra.mxu0 0.0
        %405 = vmatprep.mubr.f32.mxu0 0.0
        %406 = vmatmul.mubr.f32.gmra.mrb[0].mxu0 %v192
        %v407 = vpop.f32.mrb[0].mxu0
        %v408 = vadd.f32 0.0, %v407
        %v409 = vpop.f32.mrb[0].mxu0
        %410 = vmatprep.mubr.f32.mxu0 0.0
        %411 = vmatmul.mubr.f32.gmra.mrb[0].mxu0 %v193
        %v412 = vpop.f32.mrb[0].mxu0
        %v413 = vadd.f32 0.0, %v412
        %v414 = vpop.f32.mrb[0].mxu0
        %415 = vdwg.mxu0
        %v416 = vmul.f32 %v192, %v192
        %v417 = vmul.f32 %v193, %v193
        %418 = vmatprep.subr.mxu0 0.0
        %419 = vmatpush1.xpose.msra.mxu0 %v416
        %420 = vmatprep.subr.mxu0 0.0
        %421 = vmatpush1.xpose.msra.mxu0 %v417
        %422 = vmatprep.subr.mxu0 0.0
        %423 = vmatpush1.xpose.msra.mxu0 0.0
        %424 = vmatprep.subr.mxu0 0.0
        %425 = vmatpush1.xpose.msra.mxu0 0.0
        %426 = vmatprep.subr.mxu0 0.0
        %427 = vmatpush1.xpose.msra.mxu0 0.0
        %428 = vmatprep.subr.mxu0 0.0
        %429 = vmatpush1.xpose.msra.mxu0 0.0
        %430 = vmatprep.subr.mxu0 0.0
        %431 = vmatpush1.xpose.msra.mxu0 0.0
        %432 = vmatprep.subr.mxu0 0.0
        %433 = vmatpush1.xpose.msra.mxu0 0.0
        %434 = vmatprep.subr.mxu0 0.0
        %435 = vmatpush1.xpose.msra.mxu0 0.0
        %436 = vmatprep.subr.mxu0 0.0
        %437 = vmatpush1.xpose.msra.mxu0 0.0
        %438 = vmatprep.subr.mxu0 0.0
        %439 = vmatpush1.xpose.msra.mxu0 0.0
        %440 = vmatprep.subr.mxu0 0.0
        %441 = vmatpush1.xpose.msra.mxu0 0.0
        %442 = vmatprep.subr.mxu0 0.0
        %443 = vmatpush1.xpose.msra.mxu0 0.0
        %444 = vmatprep.subr.mxu0 0.0
        %445 = vmatpush1.xpose.msra.mxu0 0.0
        %446 = vmatprep.subr.mxu0 0.0
        %447 = vmatpush1.xpose.msra.mxu0 0.0
        %448 = vmatprep.subr.mxu0 0.0
        %449 = vmatpush1.xpose.msra.mxu0 0.0
        %450 = vmatprep.subr.mxu0 0.0
        %451 = vmatpush1.xpose.msra.mxu0 0.0
        %452 = vmatprep.subr.mxu0 0.0
        %453 = vmatpush1.xpose.msra.mxu0 0.0
        %454 = vmatprep.subr.mxu0 0.0
        %455 = vmatpush1.xpose.msra.mxu0 0.0
        %456 = vmatprep.subr.mxu0 0.0
        %457 = vmatpush1.xpose.msra.mxu0 0.0
        %458 = vmatprep.subr.mxu0 0.0
        %459 = vmatpush1.xpose.msra.mxu0 0.0
        %460 = vmatprep.subr.mxu0 0.0
        %461 = vmatpush1.xpose.msra.mxu0 0.0
        %462 = vmatprep.subr.mxu0 0.0
        %463 = vmatpush1.xpose.msra.mxu0 0.0
        %464 = vmatprep.subr.mxu0 0.0
        %465 = vmatpush1.xpose.msra.mxu0 0.0
        %466 = vmatprep.subr.mxu0 0.0
        %467 = vmatpush1.xpose.msra.mxu0 0.0
        %468 = vmatprep.subr.mxu0 0.0
        %469 = vmatpush1.xpose.msra.mxu0 0.0
        %470 = vmatprep.subr.mxu0 0.0
        %471 = vmatpush1.xpose.msra.mxu0 0.0
        %472 = vmatprep.subr.mxu0 0.0
        %473 = vmatpush1.xpose.msra.mxu0 0.0
        %474 = vmatprep.subr.mxu0 0.0
        %475 = vmatpush1.xpose.msra.mxu0 0.0
        %476 = vmatprep.subr.mxu0 0.0
        %477 = vmatpush1.xpose.msra.mxu0 0.0
        %478 = vmatprep.subr.mxu0 0.0
        %479 = vmatpush1.xpose.msra.mxu0 0.0
        %480 = vmatprep.subr.mxu0 0.0
        %481 = vmatpush1.xpose.msra.mxu0 0.0
        %482 = vmatprep.mubr.f32.mxu0 0.0
        %483 = vmatmul.mubr.f32.gmra.mrb[0].mxu0 1.0
        %v484 = vpop.f32.mrb[0].mxu0
        %v485 = vadd.f32 0.0, %v484
        %v486 = vpop.f32.mrb[0].mxu0
        %487 = vdwg.mxu0
        %v488 = vlaneseq
        %v489 = vand.u32 %v488, 127
        %v490 = vlaneseq
        %v491 = vshrl.u32 %v490, 7
        %v492 = vstv %s189
        %v493 = vadd.s32 %v491, %v492
        %vm494 = vcmp.eq.s32.totalorder %v489, %v493
        %s495 = scalar_lea.vmem [#allocation5], %s189
        %v496 = vld [vmem:[%s495] sm:$0xff]
        %497 = vmatprep.subr.mxu0 0.0
        %498 = vmatpush1.xpose.msra.mxu0 %v190
        %499 = vmatprep.subr.mxu0 0.0
        %500 = vmatpush1.xpose.msra.mxu0 %v191
        %501 = vmatprep.subr.mxu0 0.0
        %502 = vmatpush1.xpose.msra.mxu0 0.0
        %503 = vmatprep.subr.mxu0 0.0
        %504 = vmatpush1.xpose.msra.mxu0 0.0
        %505 = vmatprep.subr.mxu0 0.0
        %506 = vmatpush1.xpose.msra.mxu0 0.0
        %507 = vmatprep.subr.mxu0 0.0
        %508 = vmatpush1.xpose.msra.mxu0 0.0
        %509 = vmatprep.subr.mxu0 0.0
        %510 = vmatpush1.xpose.msra.mxu0 0.0
        %511 = vmatprep.subr.mxu0 0.0
        %512 = vmatpush1.xpose.msra.mxu0 0.0
        %513 = vmatprep.subr.mxu0 0.0
        %514 = vmatpush1.xpose.msra.mxu0 0.0
        %515 = vmatprep.subr.mxu0 0.0
        %516 = vmatpush1.xpose.msra.mxu0 0.0
        %517 = vmatprep.subr.mxu0 0.0
        %518 = vmatpush1.xpose.msra.mxu0 0.0
        %519 = vmatprep.subr.mxu0 0.0
        %520 = vmatpush1.xpose.msra.mxu0 0.0
        %521 = vmatprep.subr.mxu0 0.0
        %522 = vmatpush1.xpose.msra.mxu0 0.0
        %523 = vmatprep.subr.mxu0 0.0
        %524 = vmatpush1.xpose.msra.mxu0 0.0
        %525 = vmatprep.subr.mxu0 0.0
        %526 = vmatpush1.xpose.msra.mxu0 0.0
        %527 = vmatprep.subr.mxu0 0.0
        %528 = vmatpush1.xpose.msra.mxu0 0.0
        %529 = vmatprep.subr.mxu0 0.0
        %530 = vmatpush1.xpose.msra.mxu0 0.0
        %531 = vmatprep.subr.mxu0 0.0
        %532 = vmatpush1.xpose.msra.mxu0 0.0
        %533 = vmatprep.subr.mxu0 0.0
        %534 = vmatpush1.xpose.msra.mxu0 0.0
        %535 = vmatprep.subr.mxu0 0.0
        %536 = vmatpush1.xpose.msra.mxu0 0.0
        %537 = vmatprep.subr.mxu0 0.0
        %538 = vmatpush1.xpose.msra.mxu0 0.0
        %539 = vmatprep.subr.mxu0 0.0
        %540 = vmatpush1.xpose.msra.mxu0 0.0
        %541 = vmatprep.subr.mxu0 0.0
        %542 = vmatpush1.xpose.msra.mxu0 0.0
        %543 = vmatprep.subr.mxu0 0.0
        %544 = vmatpush1.xpose.msra.mxu0 0.0
        %545 = vmatprep.subr.mxu0 0.0
        %546 = vmatpush1.xpose.msra.mxu0 0.0
        %547 = vmatprep.subr.mxu0 0.0
        %548 = vmatpush1.xpose.msra.mxu0 0.0
        %549 = vmatprep.subr.mxu0 0.0
        %550 = vmatpush1.xpose.msra.mxu0 0.0
        %551 = vmatprep.subr.mxu0 0.0
        %552 = vmatpush1.xpose.msra.mxu0 0.0
        %553 = vmatprep.subr.mxu0 0.0
        %554 = vmatpush1.xpose.msra.mxu0 0.0
        %555 = vmatprep.subr.mxu0 0.0
        %556 = vmatpush1.xpose.msra.mxu0 0.0
        %557 = vmatprep.subr.mxu0 0.0
        %558 = vmatpush1.xpose.msra.mxu0 0.0
        %559 = vmatprep.subr.mxu0 0.0
        %560 = vmatpush1.xpose.msra.mxu0 0.0
        %561 = vmatprep.mubr.f32.mxu0 0.0
        %562 = vmatmul.mubr.f32.gmra.mrb[0].mxu0 %v496
        %v563 = vpop.f32.mrb[0].mxu0
        %v564 = vadd.f32 0.0, %v563
        %v565 = vpop.f32.mrb[0].mxu0
        %566 = vdwg.mxu0
        %v567 = vmul.f32 %v496, %v496
        %568 = vadd.xlane.f32.xlu0 %v567
        %v569 = vpop.xlane.xlu0 %568
        %v570 = vlaneseq
        %v571 = vshrl.u32 %v570, 7
        %v572 = vsub.s32 0, %v571
        %v573 = vrot.slane %v338, %v572
        %v574 = vadd.f32 %v569, %v573
        %v575 = vmul.f32 %v564, 2.0
        %v576 = vsub.f32 %v574, %v575
        %v577 = vmax.f32 %v576, 0.0
        %v578 = vmax.f32 %v577, 1e-24
        %v579 = vrsqrt.pop %v578
        %v580 = vsel %vm494, 0.0, %v579
        %v582 = vcombine.high %v564, %v564
        %v584 = vunpack.c.l.s4 1966171168
        %v585 = vunpack.c.0.s8 %v584
        %v586 = vlaneseq
        %v587 = vshrl.u32 %v586, 7
        %v588 = vsub.s32 %v585, %v587
        %v589 = vrot.slane %v564, %v588
        %v591 = vunpack.c.l.s4 1966171168
        %v592 = vunpack.c.0.s8 %v591
        %v593 = vlaneseq
        %v594 = vshrl.u32 %v593, 7
        %v595 = vsub.s32 %v592, %v594
        %v596 = vrot.slane %v582, %v595
        %v597 = vcombine.high %v589, %v589
        %v598 = vcombine.high %v596, %v596
        %v600 = vunpack.c.l.s4 1966171168
        %v601 = vunpack.c.0.s8 %v600
        %v602 = vlaneseq
        %v603 = vshrl.u32 %v602, 7
        %v604 = vsub.s32 %v601, %v603
        %v605 = vrot.slane %v589, %v604
        %v607 = vunpack.c.l.s4 1966171168
        %v608 = vunpack.c.0.s8 %v607
        %v609 = vlaneseq
        %v610 = vshrl.u32 %v609, 7
        %v611 = vsub.s32 %v608, %v610
        %v612 = vrot.slane %v596, %v611
        %v614 = vunpack.c.l.s4 1966171168
        %v615 = vunpack.c.0.s8 %v614
        %v616 = vlaneseq
        %v617 = vshrl.u32 %v616, 7
        %v618 = vsub.s32 %v615, %v617
        %v619 = vrot.slane %v597, %v618
        %v621 = vunpack.c.l.s4 1966171168
        %v622 = vunpack.c.0.s8 %v621
        %v623 = vlaneseq
        %v624 = vshrl.u32 %v623, 7
        %v625 = vsub.s32 %v622, %v624
        %v626 = vrot.slane %v598, %v625
        %v627 = vcombine.high %v605, %v605
        %v628 = vcombine.high %v612, %v612
        %v629 = vcombine.high %v619, %v619
        %v630 = vcombine.high %v626, %v626
        %v631 = vlaneseq
        %v632 = vshrl.u32 %v631, 7
        %v633 = vsub.s32 0, %v632
        %v634 = vrot.slane %v605, %v633
        %v635 = vlaneseq
        %v636 = vshrl.u32 %v635, 7
        %v637 = vsub.s32 0, %v636
        %v638 = vrot.slane %v619, %v637
        %v639 = vlaneseq
        %v640 = vshrl.u32 %v639, 7
        %v641 = vsub.s32 0, %v640
        %v642 = vrot.slane %v627, %v641
        %v643 = vlaneseq
        %v644 = vshrl.u32 %v643, 7
        %v645 = vsub.s32 0, %v644
        %v646 = vrot.slane %v629, %v645
        %v647 = vlaneseq
        %v648 = vshrl.u32 %v647, 7
        %v649 = vsub.s32 0, %v648
        %v650 = vrot.slane %v612, %v649
        %v651 = vlaneseq
        %v652 = vshrl.u32 %v651, 7
        %v653 = vsub.s32 0, %v652
        %v654 = vrot.slane %v626, %v653
        %v655 = vlaneseq
        %v656 = vshrl.u32 %v655, 7
        %v657 = vsub.s32 0, %v656
        %v658 = vrot.slane %v628, %v657
        %v659 = vlaneseq
        %v660 = vshrl.u32 %v659, 7
        %v661 = vsub.s32 0, %v660
        %v662 = vrot.slane %v630, %v661
        %v671 = vsub.f32 %v261, %v634
        %v672 = vsub.f32 %v266, %v634
        %v673 = vsub.f32 %v261, %v638
        %v674 = vsub.f32 %v266, %v638
        %v675 = vsub.f32 %v261, %v642
        %v676 = vsub.f32 %v266, %v642
        %v677 = vsub.f32 %v261, %v646
        %v678 = vsub.f32 %v266, %v646
        %v679 = vsub.f32 %v261, %v650
        %v680 = vsub.f32 %v266, %v650
        %v681 = vsub.f32 %v261, %v654
        %v682 = vsub.f32 %v266, %v654
        %v683 = vsub.f32 %v261, %v658
        %v684 = vsub.f32 %v266, %v658
        %v685 = vsub.f32 %v261, %v662
        %v686 = vsub.f32 %v266, %v662
        %v687 = vlaneseq
        %v688 = vshrl.u32 %v687, 7
        %v689 = vsub.s32 0, %v688
        %v690 = vrot.slane %v564, %v689
        %692 = vbcast.lane.b32.xlu0 %v690, 256
        %v693 = vpop.permute.xlu0 %692
        %s695 = sor.u32 256, 8
        %696 = vbcast.lane.b32.xlu0 %v690, %s695
        %v697 = vpop.permute.xlu0 %696
        %v698 = vlaneseq
        %v699 = vshrl.u32 %v698, 7
        %v700 = vsub.s32 1, %v699
        %v701 = vrot.slane %v564, %v700
        %703 = vbcast.lane.b32.xlu0 %v701, 256
        %v704 = vpop.permute.xlu0 %703
        %s706 = sor.u32 256, 8
        %707 = vbcast.lane.b32.xlu0 %v701, %s706
        %v708 = vpop.permute.xlu0 %707
        %v709 = vlaneseq
        %v710 = vshrl.u32 %v709, 7
        %v711 = vsub.s32 2, %v710
        %v712 = vrot.slane %v564, %v711
        %714 = vbcast.lane.b32.xlu0 %v712, 256
        %v715 = vpop.permute.xlu0 %714
        %s717 = sor.u32 256, 8
        %718 = vbcast.lane.b32.xlu0 %v712, %s717
        %v719 = vpop.permute.xlu0 %718
        %v720 = vlaneseq
        %v721 = vshrl.u32 %v720, 7
        %v722 = vsub.s32 3, %v721
        %v723 = vrot.slane %v564, %v722
        %725 = vbcast.lane.b32.xlu0 %v723, 256
        %v726 = vpop.permute.xlu0 %725
        %s728 = sor.u32 256, 8
        %729 = vbcast.lane.b32.xlu0 %v723, %s728
        %v730 = vpop.permute.xlu0 %729
        %v731 = vlaneseq
        %v732 = vshrl.u32 %v731, 7
        %v733 = vsub.s32 4, %v732
        %v734 = vrot.slane %v564, %v733
        %736 = vbcast.lane.b32.xlu0 %v734, 256
        %v737 = vpop.permute.xlu0 %736
        %s739 = sor.u32 256, 8
        %740 = vbcast.lane.b32.xlu0 %v734, %s739
        %v741 = vpop.permute.xlu0 %740
        %v742 = vlaneseq
        %v743 = vshrl.u32 %v742, 7
        %v744 = vsub.s32 5, %v743
        %v745 = vrot.slane %v564, %v744
        %747 = vbcast.lane.b32.xlu0 %v745, 256
        %v748 = vpop.permute.xlu0 %747
        %s750 = sor.u32 256, 8
        %751 = vbcast.lane.b32.xlu0 %v745, %s750
        %v752 = vpop.permute.xlu0 %751
        %v753 = vlaneseq
        %v754 = vshrl.u32 %v753, 7
        %v755 = vsub.s32 6, %v754
        %v756 = vrot.slane %v564, %v755
        %758 = vbcast.lane.b32.xlu0 %v756, 256
        %v759 = vpop.permute.xlu0 %758
        %s761 = sor.u32 256, 8
        %762 = vbcast.lane.b32.xlu0 %v756, %s761
        %v763 = vpop.permute.xlu0 %762
        %v764 = vlaneseq
        %v765 = vshrl.u32 %v764, 7
        %v766 = vsub.s32 7, %v765
        %v767 = vrot.slane %v564, %v766
        %769 = vbcast.lane.b32.xlu0 %v767, 256
        %v770 = vpop.permute.xlu0 %769
        %s772 = sor.u32 256, 8
        %773 = vbcast.lane.b32.xlu0 %v767, %s772
        %v774 = vpop.permute.xlu0 %773
        %v775 = vsub.f32 %v671, %v693
        %v776 = vsub.f32 %v672, %v697
        %v777 = vsub.f32 %v673, %v704
        %v778 = vsub.f32 %v674, %v708
        %v779 = vsub.f32 %v675, %v715
        %v780 = vsub.f32 %v676, %v719
        %v781 = vsub.f32 %v677, %v726
        %v782 = vsub.f32 %v678, %v730
        %v783 = vsub.f32 %v679, %v737
        %v784 = vsub.f32 %v680, %v741
        %v785 = vsub.f32 %v681, %v748
        %v786 = vsub.f32 %v682, %v752
        %v787 = vsub.f32 %v683, %v759
        %v788 = vsub.f32 %v684, %v763
        %v789 = vsub.f32 %v685, %v770
        %v790 = vsub.f32 %v686, %v774
        %v792 = vlaneseq
        %v793 = vshrl.u32 %v792, 7
        %v794 = vsub.s32 0, %v793
        %v795 = vrot.slane %v569, %v794
        %v796 = vlaneseq
        %v797 = vshrl.u32 %v796, 7
        %v798 = vsub.s32 1, %v797
        %v799 = vrot.slane %v569, %v798
        %v800 = vlaneseq
        %v801 = vshrl.u32 %v800, 7
        %v802 = vsub.s32 2, %v801
        %v803 = vrot.slane %v569, %v802
        %v804 = vlaneseq
        %v805 = vshrl.u32 %v804, 7
        %v806 = vsub.s32 3, %v805
        %v807 = vrot.slane %v569, %v806
        %v808 = vlaneseq
        %v809 = vshrl.u32 %v808, 7
        %v810 = vsub.s32 4, %v809
        %v811 = vrot.slane %v569, %v810
        %v812 = vlaneseq
        %v813 = vshrl.u32 %v812, 7
        %v814 = vsub.s32 5, %v813
        %v815 = vrot.slane %v569, %v814
        %v816 = vlaneseq
        %v817 = vshrl.u32 %v816, 7
        %v818 = vsub.s32 6, %v817
        %v819 = vrot.slane %v569, %v818
        %v820 = vlaneseq
        %v821 = vshrl.u32 %v820, 7
        %v822 = vsub.s32 7, %v821
        %v823 = vrot.slane %v569, %v822
        %v832 = vadd.f32 %v775, %v795
        %v833 = vadd.f32 %v776, %v795
        %v834 = vadd.f32 %v777, %v799
        %v835 = vadd.f32 %v778, %v799
        %v836 = vadd.f32 %v779, %v803
        %v837 = vadd.f32 %v780, %v803
        %v838 = vadd.f32 %v781, %v807
        %v839 = vadd.f32 %v782, %v807
        %v840 = vadd.f32 %v783, %v811
        %v841 = vadd.f32 %v784, %v811
        %v842 = vadd.f32 %v785, %v815
        %v843 = vadd.f32 %v786, %v815
        %v844 = vadd.f32 %v787, %v819
        %v845 = vadd.f32 %v788, %v819
        %v846 = vadd.f32 %v789, %v823
        %v847 = vadd.f32 %v790, %v823
        %v848 = vlaneseq
        %v849 = vshrl.u32 %v848, 7
        %v850 = vsub.s32 0, %v849
        %v851 = vrot.slane %v580, %v850
        %853 = vbcast.lane.b32.xlu0 %v851, 256
        %v854 = vpop.permute.xlu0 %853
        %s856 = sor.u32 256, 8
        %857 = vbcast.lane.b32.xlu0 %v851, %s856
        %v858 = vpop.permute.xlu0 %857
        %v859 = vlaneseq
        %v860 = vshrl.u32 %v859, 7
        %v861 = vsub.s32 1, %v860
        %v862 = vrot.slane %v580, %v861
        %864 = vbcast.lane.b32.xlu0 %v862, 256
        %v865 = vpop.permute.xlu0 %864
        %s867 = sor.u32 256, 8
        %868 = vbcast.lane.b32.xlu0 %v862, %s867
        %v869 = vpop.permute.xlu0 %868
        %v870 = vlaneseq
        %v871 = vshrl.u32 %v870, 7
        %v872 = vsub.s32 2, %v871
        %v873 = vrot.slane %v580, %v872
        %875 = vbcast.lane.b32.xlu0 %v873, 256
        %v876 = vpop.permute.xlu0 %875
        %s878 = sor.u32 256, 8
        %879 = vbcast.lane.b32.xlu0 %v873, %s878
        %v880 = vpop.permute.xlu0 %879
        %v881 = vlaneseq
        %v882 = vshrl.u32 %v881, 7
        %v883 = vsub.s32 3, %v882
        %v884 = vrot.slane %v580, %v883
        %886 = vbcast.lane.b32.xlu0 %v884, 256
        %v887 = vpop.permute.xlu0 %886
        %s889 = sor.u32 256, 8
        %890 = vbcast.lane.b32.xlu0 %v884, %s889
        %v891 = vpop.permute.xlu0 %890
        %v892 = vlaneseq
        %v893 = vshrl.u32 %v892, 7
        %v894 = vsub.s32 4, %v893
        %v895 = vrot.slane %v580, %v894
        %897 = vbcast.lane.b32.xlu0 %v895, 256
        %v898 = vpop.permute.xlu0 %897
        %s900 = sor.u32 256, 8
        %901 = vbcast.lane.b32.xlu0 %v895, %s900
        %v902 = vpop.permute.xlu0 %901
        %v903 = vlaneseq
        %v904 = vshrl.u32 %v903, 7
        %v905 = vsub.s32 5, %v904
        %v906 = vrot.slane %v580, %v905
        %908 = vbcast.lane.b32.xlu0 %v906, 256
        %v909 = vpop.permute.xlu0 %908
        %s911 = sor.u32 256, 8
        %912 = vbcast.lane.b32.xlu0 %v906, %s911
        %v913 = vpop.permute.xlu0 %912
        %v914 = vlaneseq
        %v915 = vshrl.u32 %v914, 7
        %v916 = vsub.s32 6, %v915
        %v917 = vrot.slane %v580, %v916
        %919 = vbcast.lane.b32.xlu0 %v917, 256
        %v920 = vpop.permute.xlu0 %919
        %s922 = sor.u32 256, 8
        %923 = vbcast.lane.b32.xlu0 %v917, %s922
        %v924 = vpop.permute.xlu0 %923
        %v925 = vlaneseq
        %v926 = vshrl.u32 %v925, 7
        %v927 = vsub.s32 7, %v926
        %v928 = vrot.slane %v580, %v927
        %930 = vbcast.lane.b32.xlu0 %v928, 256
        %v931 = vpop.permute.xlu0 %930
        %s933 = sor.u32 256, 8
        %934 = vbcast.lane.b32.xlu0 %v928, %s933
        %v935 = vpop.permute.xlu0 %934
        %v937 = vcombine.high %v580, %v580
        %v939 = vunpack.c.l.s4 1966171168
        %v940 = vunpack.c.0.s8 %v939
        %v941 = vlaneseq
        %v942 = vshrl.u32 %v941, 7
        %v943 = vsub.s32 %v940, %v942
        %v944 = vrot.slane %v580, %v943
        %v946 = vunpack.c.l.s4 1966171168
        %v947 = vunpack.c.0.s8 %v946
        %v948 = vlaneseq
        %v949 = vshrl.u32 %v948, 7
        %v950 = vsub.s32 %v947, %v949
        %v951 = vrot.slane %v937, %v950
        %v952 = vcombine.high %v944, %v944
        %v953 = vcombine.high %v951, %v951
        %v955 = vunpack.c.l.s4 1966171168
        %v956 = vunpack.c.0.s8 %v955
        %v957 = vlaneseq
        %v958 = vshrl.u32 %v957, 7
        %v959 = vsub.s32 %v956, %v958
        %v960 = vrot.slane %v944, %v959
        %v962 = vunpack.c.l.s4 1966171168
        %v963 = vunpack.c.0.s8 %v962
        %v964 = vlaneseq
        %v965 = vshrl.u32 %v964, 7
        %v966 = vsub.s32 %v963, %v965
        %v967 = vrot.slane %v951, %v966
        %v969 = vunpack.c.l.s4 1966171168
        %v970 = vunpack.c.0.s8 %v969
        %v971 = vlaneseq
        %v972 = vshrl.u32 %v971, 7
        %v973 = vsub.s32 %v970, %v972
        %v974 = vrot.slane %v952, %v973
        %v976 = vunpack.c.l.s4 1966171168
        %v977 = vunpack.c.0.s8 %v976
        %v978 = vlaneseq
        %v979 = vshrl.u32 %v978, 7
        %v980 = vsub.s32 %v977, %v979
        %v981 = vrot.slane %v953, %v980
        %v982 = vcombine.high %v960, %v960
        %v983 = vcombine.high %v967, %v967
        %v984 = vcombine.high %v974, %v974
        %v985 = vcombine.high %v981, %v981
        %v986 = vlaneseq
        %v987 = vshrl.u32 %v986, 7
        %v988 = vsub.s32 0, %v987
        %v989 = vrot.slane %v960, %v988
        %v990 = vlaneseq
        %v991 = vshrl.u32 %v990, 7
        %v992 = vsub.s32 0, %v991
        %v993 = vrot.slane %v974, %v992
        %v994 = vlaneseq
        %v995 = vshrl.u32 %v994, 7
        %v996 = vsub.s32 0, %v995
        %v997 = vrot.slane %v982, %v996
        %v998 = vlaneseq
        %v999 = vshrl.u32 %v998, 7
        %v1000 = vsub.s32 0, %v999
        %v1001 = vrot.slane %v984, %v1000
        %v1002 = vlaneseq
        %v1003 = vshrl.u32 %v1002, 7
        %v1004 = vsub.s32 0, %v1003
        %v1005 = vrot.slane %v967, %v1004
        %v1006 = vlaneseq
        %v1007 = vshrl.u32 %v1006, 7
        %v1008 = vsub.s32 0, %v1007
        %v1009 = vrot.slane %v981, %v1008
        %v1010 = vlaneseq
        %v1011 = vshrl.u32 %v1010, 7
        %v1012 = vsub.s32 0, %v1011
        %v1013 = vrot.slane %v983, %v1012
        %v1014 = vlaneseq
        %v1015 = vshrl.u32 %v1014, 7
        %v1016 = vsub.s32 0, %v1015
        %v1017 = vrot.slane %v985, %v1016
        %v1026 = vmul.f32 %v854, %v989
        %v1027 = vmul.f32 %v858, %v989
        %v1028 = vmul.f32 %v865, %v993
        %v1029 = vmul.f32 %v869, %v993
        %v1030 = vmul.f32 %v876, %v997
        %v1031 = vmul.f32 %v880, %v997
        %v1032 = vmul.f32 %v887, %v1001
        %v1033 = vmul.f32 %v891, %v1001
        %v1034 = vmul.f32 %v898, %v1005
        %v1035 = vmul.f32 %v902, %v1005
        %v1036 = vmul.f32 %v909, %v1009
        %v1037 = vmul.f32 %v913, %v1009
        %v1038 = vmul.f32 %v920, %v1013
        %v1039 = vmul.f32 %v924, %v1013
        %v1040 = vmul.f32 %v931, %v1017
        %v1041 = vmul.f32 %v935, %v1017
        %v1042 = vmul.f32 %v832, %v1026
        %v1043 = vmul.f32 %v833, %v1027
        %v1044 = vmul.f32 %v834, %v1028
        %v1045 = vmul.f32 %v835, %v1029
        %v1046 = vmul.f32 %v836, %v1030
        %v1047 = vmul.f32 %v837, %v1031
        %v1048 = vmul.f32 %v838, %v1032
        %v1049 = vmul.f32 %v839, %v1033
        %v1050 = vmul.f32 %v840, %v1034
        %v1051 = vmul.f32 %v841, %v1035
        %v1052 = vmul.f32 %v842, %v1036
        %v1053 = vmul.f32 %v843, %v1037
        %v1054 = vmul.f32 %v844, %v1038
        %v1055 = vmul.f32 %v845, %v1039
        %v1056 = vmul.f32 %v846, %v1040
        %v1057 = vmul.f32 %v847, %v1041
        %s1058 = scalar_lea.vmem [#allocation6], %s189
        %v1059 = vld [vmem:[%s1058] sm:$0xff]
        %1060 = vmatprep.subr.mxu0 0.0
        %1061 = vmatpush1.xpose.msra.mxu0 %v192
        %1062 = vmatprep.subr.mxu0 0.0
        %1063 = vmatpush1.xpose.msra.mxu0 %v193
        %1064 = vmatprep.subr.mxu0 0.0
        %1065 = vmatpush1.xpose.msra.mxu0 0.0
        %1066 = vmatprep.subr.mxu0 0.0
        %1067 = vmatpush1.xpose.msra.mxu0 0.0
        %1068 = vmatprep.subr.mxu0 0.0
        %1069 = vmatpush1.xpose.msra.mxu0 0.0
        %1070 = vmatprep.subr.mxu0 0.0
        %1071 = vmatpush1.xpose.msra.mxu0 0.0
        %1072 = vmatprep.subr.mxu0 0.0
        %1073 = vmatpush1.xpose.msra.mxu0 0.0
        %1074 = vmatprep.subr.mxu0 0.0
        %1075 = vmatpush1.xpose.msra.mxu0 0.0
        %1076 = vmatprep.subr.mxu0 0.0
        %1077 = vmatpush1.xpose.msra.mxu0 0.0
        %1078 = vmatprep.subr.mxu0 0.0
        %1079 = vmatpush1.xpose.msra.mxu0 0.0
        %1080 = vmatprep.subr.mxu0 0.0
        %1081 = vmatpush1.xpose.msra.mxu0 0.0
        %1082 = vmatprep.subr.mxu0 0.0
        %1083 = vmatpush1.xpose.msra.mxu0 0.0
        %1084 = vmatprep.subr.mxu0 0.0
        %1085 = vmatpush1.xpose.msra.mxu0 0.0
        %1086 = vmatprep.subr.mxu0 0.0
        %1087 = vmatpush1.xpose.msra.mxu0 0.0
        %1088 = vmatprep.subr.mxu0 0.0
        %1089 = vmatpush1.xpose.msra.mxu0 0.0
        %1090 = vmatprep.subr.mxu0 0.0
        %1091 = vmatpush1.xpose.msra.mxu0 0.0
        %1092 = vmatprep.subr.mxu0 0.0
        %1093 = vmatpush1.xpose.msra.mxu0 0.0
        %1094 = vmatprep.subr.mxu0 0.0
        %1095 = vmatpush1.xpose.msra.mxu0 0.0
        %1096 = vmatprep.subr.mxu0 0.0
        %1097 = vmatpush1.xpose.msra.mxu0 0.0
        %1098 = vmatprep.subr.mxu0 0.0
        %1099 = vmatpush1.xpose.msra.mxu0 0.0
        %1100 = vmatprep.subr.mxu0 0.0
        %1101 = vmatpush1.xpose.msra.mxu0 0.0
        %1102 = vmatprep.subr.mxu0 0.0
        %1103 = vmatpush1.xpose.msra.mxu0 0.0
        %1104 = vmatprep.subr.mxu0 0.0
        %1105 = vmatpush1.xpose.msra.mxu0 0.0
        %1106 = vmatprep.subr.mxu0 0.0
        %1107 = vmatpush1.xpose.msra.mxu0 0.0
        %1108 = vmatprep.subr.mxu0 0.0
        %1109 = vmatpush1.xpose.msra.mxu0 0.0
        %1110 = vmatprep.subr.mxu0 0.0
        %1111 = vmatpush1.xpose.msra.mxu0 0.0
        %1112 = vmatprep.subr.mxu0 0.0
        %1113 = vmatpush1.xpose.msra.mxu0 0.0
        %1114 = vmatprep.subr.mxu0 0.0
        %1115 = vmatpush1.xpose.msra.mxu0 0.0
        %1116 = vmatprep.subr.mxu0 0.0
        %1117 = vmatpush1.xpose.msra.mxu0 0.0
        %1118 = vmatprep.subr.mxu0 0.0
        %1119 = vmatpush1.xpose.msra.mxu0 0.0
        %1120 = vmatprep.subr.mxu0 0.0
        %1121 = vmatpush1.xpose.msra.mxu0 0.0
        %1122 = vmatprep.subr.mxu0 0.0
        %1123 = vmatpush1.xpose.msra.mxu0 0.0
        %1124 = vmatprep.mubr.f32.mxu0 0.0
        %1125 = vmatmul.mubr.f32.gmra.mrb[0].mxu0 %v1059
        %v1126 = vpop.f32.mrb[0].mxu0
        %v1127 = vadd.f32 0.0, %v1126
        %v1128 = vpop.f32.mrb[0].mxu0
        %1129 = vdwg.mxu0
        %v1130 = vmul.f32 %v1059, %v1059
        %1131 = vadd.xlane.f32.xlu0 %v1130
        %v1132 = vpop.xlane.xlu0 %1131
        %v1133 = vlaneseq
        %v1134 = vshrl.u32 %v1133, 7
        %v1135 = vsub.s32 0, %v1134
        %v1136 = vrot.slane %v485, %v1135
        %v1137 = vadd.f32 %v1132, %v1136
        %v1138 = vmul.f32 %v1127, 2.0
        %v1139 = vsub.f32 %v1137, %v1138
        %v1140 = vmax.f32 %v1139, 0.0
        %v1141 = vmax.f32 %v1140, 1e-24
        %v1142 = vrsqrt.pop %v1141
        %v1143 = vsel %vm494, 0.0, %v1142
        %v1145 = vcombine.high %v1127, %v1127
        %v1147 = vunpack.c.l.s4 1966171168
        %v1148 = vunpack.c.0.s8 %v1147
        %v1149 = vlaneseq
        %v1150 = vshrl.u32 %v1149, 7
        %v1151 = vsub.s32 %v1148, %v1150
        %v1152 = vrot.slane %v1127, %v1151
        %v1154 = vunpack.c.l.s4 1966171168
        %v1155 = vunpack.c.0.s8 %v1154
        %v1156 = vlaneseq
        %v1157 = vshrl.u32 %v1156, 7
        %v1158 = vsub.s32 %v1155, %v1157
        %v1159 = vrot.slane %v1145, %v1158
        %v1160 = vcombine.high %v1152, %v1152
        %v1161 = vcombine.high %v1159, %v1159
        %v1163 = vunpack.c.l.s4 1966171168
        %v1164 = vunpack.c.0.s8 %v1163
        %v1165 = vlaneseq
        %v1166 = vshrl.u32 %v1165, 7
        %v1167 = vsub.s32 %v1164, %v1166
        %v1168 = vrot.slane %v1152, %v1167
        %v1170 = vunpack.c.l.s4 1966171168
        %v1171 = vunpack.c.0.s8 %v1170
        %v1172 = vlaneseq
        %v1173 = vshrl.u32 %v1172, 7
        %v1174 = vsub.s32 %v1171, %v1173
        %v1175 = vrot.slane %v1159, %v1174
        %v1177 = vunpack.c.l.s4 1966171168
        %v1178 = vunpack.c.0.s8 %v1177
        %v1179 = vlaneseq
        %v1180 = vshrl.u32 %v1179, 7
        %v1181 = vsub.s32 %v1178, %v1180
        %v1182 = vrot.slane %v1160, %v1181
        %v1184 = vunpack.c.l.s4 1966171168
        %v1185 = vunpack.c.0.s8 %v1184
        %v1186 = vlaneseq
        %v1187 = vshrl.u32 %v1186, 7
        %v1188 = vsub.s32 %v1185, %v1187
        %v1189 = vrot.slane %v1161, %v1188
        %v1190 = vcombine.high %v1168, %v1168
        %v1191 = vcombine.high %v1175, %v1175
        %v1192 = vcombine.high %v1182, %v1182
        %v1193 = vcombine.high %v1189, %v1189
        %v1194 = vlaneseq
        %v1195 = vshrl.u32 %v1194, 7
        %v1196 = vsub.s32 0, %v1195
        %v1197 = vrot.slane %v1168, %v1196
        %v1198 = vlaneseq
        %v1199 = vshrl.u32 %v1198, 7
        %v1200 = vsub.s32 0, %v1199
        %v1201 = vrot.slane %v1182, %v1200
        %v1202 = vlaneseq
        %v1203 = vshrl.u32 %v1202, 7
        %v1204 = vsub.s32 0, %v1203
        %v1205 = vrot.slane %v1190, %v1204
        %v1206 = vlaneseq
        %v1207 = vshrl.u32 %v1206, 7
        %v1208 = vsub.s32 0, %v1207
        %v1209 = vrot.slane %v1192, %v1208
        %v1210 = vlaneseq
        %v1211 = vshrl.u32 %v1210, 7
        %v1212 = vsub.s32 0, %v1211
        %v1213 = vrot.slane %v1175, %v1212
        %v1214 = vlaneseq
        %v1215 = vshrl.u32 %v1214, 7
        %v1216 = vsub.s32 0, %v1215
        %v1217 = vrot.slane %v1189, %v1216
        %v1218 = vlaneseq
        %v1219 = vshrl.u32 %v1218, 7
        %v1220 = vsub.s32 0, %v1219
        %v1221 = vrot.slane %v1191, %v1220
        %v1222 = vlaneseq
        %v1223 = vshrl.u32 %v1222, 7
        %v1224 = vsub.s32 0, %v1223
        %v1225 = vrot.slane %v1193, %v1224
        %v1234 = vsub.f32 %v408, %v1197
        %v1235 = vsub.f32 %v413, %v1197
        %v1236 = vsub.f32 %v408, %v1201
        %v1237 = vsub.f32 %v413, %v1201
        %v1238 = vsub.f32 %v408, %v1205
        %v1239 = vsub.f32 %v413, %v1205
        %v1240 = vsub.f32 %v408, %v1209
        %v1241 = vsub.f32 %v413, %v1209
        %v1242 = vsub.f32 %v408, %v1213
        %v1243 = vsub.f32 %v413, %v1213
        %v1244 = vsub.f32 %v408, %v1217
        %v1245 = vsub.f32 %v413, %v1217
        %v1246 = vsub.f32 %v408, %v1221
        %v1247 = vsub.f32 %v413, %v1221
        %v1248 = vsub.f32 %v408, %v1225
        %v1249 = vsub.f32 %v413, %v1225
        %v1250 = vlaneseq
        %v1251 = vshrl.u32 %v1250, 7
        %v1252 = vsub.s32 0, %v1251
        %v1253 = vrot.slane %v1127, %v1252
        %1255 = vbcast.lane.b32.xlu0 %v1253, 256
        %v1256 = vpop.permute.xlu0 %1255
        %s1258 = sor.u32 256, 8
        %1259 = vbcast.lane.b32.xlu0 %v1253, %s1258
        %v1260 = vpop.permute.xlu0 %1259
        %v1261 = vlaneseq
        %v1262 = vshrl.u32 %v1261, 7
        %v1263 = vsub.s32 1, %v1262
        %v1264 = vrot.slane %v1127, %v1263
        %1266 = vbcast.lane.b32.xlu0 %v1264, 256
        %v1267 = vpop.permute.xlu0 %1266
        %s1269 = sor.u32 256, 8
        %1270 = vbcast.lane.b32.xlu0 %v1264, %s1269
        %v1271 = vpop.permute.xlu0 %1270
        %v1272 = vlaneseq
        %v1273 = vshrl.u32 %v1272, 7
        %v1274 = vsub.s32 2, %v1273
        %v1275 = vrot.slane %v1127, %v1274
        %1277 = vbcast.lane.b32.xlu0 %v1275, 256
        %v1278 = vpop.permute.xlu0 %1277
        %s1280 = sor.u32 256, 8
        %1281 = vbcast.lane.b32.xlu0 %v1275, %s1280
        %v1282 = vpop.permute.xlu0 %1281
        %v1283 = vlaneseq
        %v1284 = vshrl.u32 %v1283, 7
        %v1285 = vsub.s32 3, %v1284
        %v1286 = vrot.slane %v1127, %v1285
        %1288 = vbcast.lane.b32.xlu0 %v1286, 256
        %v1289 = vpop.permute.xlu0 %1288
        %s1291 = sor.u32 256, 8
        %1292 = vbcast.lane.b32.xlu0 %v1286, %s1291
        %v1293 = vpop.permute.xlu0 %1292
        %v1294 = vlaneseq
        %v1295 = vshrl.u32 %v1294, 7
        %v1296 = vsub.s32 4, %v1295
        %v1297 = vrot.slane %v1127, %v1296
        %1299 = vbcast.lane.b32.xlu0 %v1297, 256
        %v1300 = vpop.permute.xlu0 %1299
        %s1302 = sor.u32 256, 8
        %1303 = vbcast.lane.b32.xlu0 %v1297, %s1302
        %v1304 = vpop.permute.xlu0 %1303
        %v1305 = vlaneseq
        %v1306 = vshrl.u32 %v1305, 7
        %v1307 = vsub.s32 5, %v1306
        %v1308 = vrot.slane %v1127, %v1307
        %1310 = vbcast.lane.b32.xlu0 %v1308, 256
        %v1311 = vpop.permute.xlu0 %1310
        %s1313 = sor.u32 256, 8
        %1314 = vbcast.lane.b32.xlu0 %v1308, %s1313
        %v1315 = vpop.permute.xlu0 %1314
        %v1316 = vlaneseq
        %v1317 = vshrl.u32 %v1316, 7
        %v1318 = vsub.s32 6, %v1317
        %v1319 = vrot.slane %v1127, %v1318
        %1321 = vbcast.lane.b32.xlu0 %v1319, 256
        %v1322 = vpop.permute.xlu0 %1321
        %s1324 = sor.u32 256, 8
        %1325 = vbcast.lane.b32.xlu0 %v1319, %s1324
        %v1326 = vpop.permute.xlu0 %1325
        %v1327 = vlaneseq
        %v1328 = vshrl.u32 %v1327, 7
        %v1329 = vsub.s32 7, %v1328
        %v1330 = vrot.slane %v1127, %v1329
        %1332 = vbcast.lane.b32.xlu0 %v1330, 256
        %v1333 = vpop.permute.xlu0 %1332
        %s1335 = sor.u32 256, 8
        %1336 = vbcast.lane.b32.xlu0 %v1330, %s1335
        %v1337 = vpop.permute.xlu0 %1336
        %v1338 = vsub.f32 %v1234, %v1256
        %v1339 = vsub.f32 %v1235, %v1260
        %v1340 = vsub.f32 %v1236, %v1267
        %v1341 = vsub.f32 %v1237, %v1271
        %v1342 = vsub.f32 %v1238, %v1278
        %v1343 = vsub.f32 %v1239, %v1282
        %v1344 = vsub.f32 %v1240, %v1289
        %v1345 = vsub.f32 %v1241, %v1293
        %v1346 = vsub.f32 %v1242, %v1300
        %v1347 = vsub.f32 %v1243, %v1304
        %v1348 = vsub.f32 %v1244, %v1311
        %v1349 = vsub.f32 %v1245, %v1315
        %v1350 = vsub.f32 %v1246, %v1322
        %v1351 = vsub.f32 %v1247, %v1326
        %v1352 = vsub.f32 %v1248, %v1333
        %v1353 = vsub.f32 %v1249, %v1337
        %v1355 = vlaneseq
        %v1356 = vshrl.u32 %v1355, 7
        %v1357 = vsub.s32 0, %v1356
        %v1358 = vrot.slane %v1132, %v1357
        %v1359 = vlaneseq
        %v1360 = vshrl.u32 %v1359, 7
        %v1361 = vsub.s32 1, %v1360
        %v1362 = vrot.slane %v1132, %v1361
        %v1363 = vlaneseq
        %v1364 = vshrl.u32 %v1363, 7
        %v1365 = vsub.s32 2, %v1364
        %v1366 = vrot.slane %v1132, %v1365
        %v1367 = vlaneseq
        %v1368 = vshrl.u32 %v1367, 7
        %v1369 = vsub.s32 3, %v1368
        %v1370 = vrot.slane %v1132, %v1369
        %v1371 = vlaneseq
        %v1372 = vshrl.u32 %v1371, 7
        %v1373 = vsub.s32 4, %v1372
        %v1374 = vrot.slane %v1132, %v1373
        %v1375 = vlaneseq
        %v1376 = vshrl.u32 %v1375, 7
        %v1377 = vsub.s32 5, %v1376
        %v1378 = vrot.slane %v1132, %v1377
        %v1379 = vlaneseq
        %v1380 = vshrl.u32 %v1379, 7
        %v1381 = vsub.s32 6, %v1380
        %v1382 = vrot.slane %v1132, %v1381
        %v1383 = vlaneseq
        %v1384 = vshrl.u32 %v1383, 7
        %v1385 = vsub.s32 7, %v1384
        %v1386 = vrot.slane %v1132, %v1385
        %v1395 = vadd.f32 %v1338, %v1358
        %v1396 = vadd.f32 %v1339, %v1358
        %v1397 = vadd.f32 %v1340, %v1362
        %v1398 = vadd.f32 %v1341, %v1362
        %v1399 = vadd.f32 %v1342, %v1366
        %v1400 = vadd.f32 %v1343, %v1366
        %v1401 = vadd.f32 %v1344, %v1370
        %v1402 = vadd.f32 %v1345, %v1370
        %v1403 = vadd.f32 %v1346, %v1374
        %v1404 = vadd.f32 %v1347, %v1374
        %v1405 = vadd.f32 %v1348, %v1378
        %v1406 = vadd.f32 %v1349, %v1378
        %v1407 = vadd.f32 %v1350, %v1382
        %v1408 = vadd.f32 %v1351, %v1382
        %v1409 = vadd.f32 %v1352, %v1386
        %v1410 = vadd.f32 %v1353, %v1386
        %v1411 = vlaneseq
        %v1412 = vshrl.u32 %v1411, 7
        %v1413 = vsub.s32 0, %v1412
        %v1414 = vrot.slane %v1143, %v1413
        %1416 = vbcast.lane.b32.xlu0 %v1414, 256
        %v1417 = vpop.permute.xlu0 %1416
        %s1419 = sor.u32 256, 8
        %1420 = vbcast.lane.b32.xlu0 %v1414, %s1419
        %v1421 = vpop.permute.xlu0 %1420
        %v1422 = vlaneseq
        %v1423 = vshrl.u32 %v1422, 7
        %v1424 = vsub.s32 1, %v1423
        %v1425 = vrot.slane %v1143, %v1424
        %1427 = vbcast.lane.b32.xlu0 %v1425, 256
        %v1428 = vpop.permute.xlu0 %1427
        %s1430 = sor.u32 256, 8
        %1431 = vbcast.lane.b32.xlu0 %v1425, %s1430
        %v1432 = vpop.permute.xlu0 %1431
        %v1433 = vlaneseq
        %v1434 = vshrl.u32 %v1433, 7
        %v1435 = vsub.s32 2, %v1434
        %v1436 = vrot.slane %v1143, %v1435
        %1438 = vbcast.lane.b32.xlu0 %v1436, 256
        %v1439 = vpop.permute.xlu0 %1438
        %s1441 = sor.u32 256, 8
        %1442 = vbcast.lane.b32.xlu0 %v1436, %s1441
        %v1443 = vpop.permute.xlu0 %1442
        %v1444 = vlaneseq
        %v1445 = vshrl.u32 %v1444, 7
        %v1446 = vsub.s32 3, %v1445
        %v1447 = vrot.slane %v1143, %v1446
        %1449 = vbcast.lane.b32.xlu0 %v1447, 256
        %v1450 = vpop.permute.xlu0 %1449
        %s1452 = sor.u32 256, 8
        %1453 = vbcast.lane.b32.xlu0 %v1447, %s1452
        %v1454 = vpop.permute.xlu0 %1453
        %v1455 = vlaneseq
        %v1456 = vshrl.u32 %v1455, 7
        %v1457 = vsub.s32 4, %v1456
        %v1458 = vrot.slane %v1143, %v1457
        %1460 = vbcast.lane.b32.xlu0 %v1458, 256
        %v1461 = vpop.permute.xlu0 %1460
        %s1463 = sor.u32 256, 8
        %1464 = vbcast.lane.b32.xlu0 %v1458, %s1463
        %v1465 = vpop.permute.xlu0 %1464
        %v1466 = vlaneseq
        %v1467 = vshrl.u32 %v1466, 7
        %v1468 = vsub.s32 5, %v1467
        %v1469 = vrot.slane %v1143, %v1468
        %1471 = vbcast.lane.b32.xlu0 %v1469, 256
        %v1472 = vpop.permute.xlu0 %1471
        %s1474 = sor.u32 256, 8
        %1475 = vbcast.lane.b32.xlu0 %v1469, %s1474
        %v1476 = vpop.permute.xlu0 %1475
        %v1477 = vlaneseq
        %v1478 = vshrl.u32 %v1477, 7
        %v1479 = vsub.s32 6, %v1478
        %v1480 = vrot.slane %v1143, %v1479
        %1482 = vbcast.lane.b32.xlu0 %v1480, 256
        %v1483 = vpop.permute.xlu0 %1482
        %s1485 = sor.u32 256, 8
        %1486 = vbcast.lane.b32.xlu0 %v1480, %s1485
        %v1487 = vpop.permute.xlu0 %1486
        %v1488 = vlaneseq
        %v1489 = vshrl.u32 %v1488, 7
        %v1490 = vsub.s32 7, %v1489
        %v1491 = vrot.slane %v1143, %v1490
        %1493 = vbcast.lane.b32.xlu0 %v1491, 256
        %v1494 = vpop.permute.xlu0 %1493
        %s1496 = sor.u32 256, 8
        %1497 = vbcast.lane.b32.xlu0 %v1491, %s1496
        %v1498 = vpop.permute.xlu0 %1497
        %v1500 = vcombine.high %v1143, %v1143
        %v1502 = vunpack.c.l.s4 1966171168
        %v1503 = vunpack.c.0.s8 %v1502
        %v1504 = vlaneseq
        %v1505 = vshrl.u32 %v1504, 7
        %v1506 = vsub.s32 %v1503, %v1505
        %v1507 = vrot.slane %v1143, %v1506
        %v1509 = vunpack.c.l.s4 1966171168
        %v1510 = vunpack.c.0.s8 %v1509
        %v1511 = vlaneseq
        %v1512 = vshrl.u32 %v1511, 7
        %v1513 = vsub.s32 %v1510, %v1512
        %v1514 = vrot.slane %v1500, %v1513
        %v1515 = vcombine.high %v1507, %v1507
        %v1516 = vcombine.high %v1514, %v1514
        %v1518 = vunpack.c.l.s4 1966171168
        %v1519 = vunpack.c.0.s8 %v1518
        %v1520 = vlaneseq
        %v1521 = vshrl.u32 %v1520, 7
        %v1522 = vsub.s32 %v1519, %v1521
        %v1523 = vrot.slane %v1507, %v1522
        %v1525 = vunpack.c.l.s4 1966171168
        %v1526 = vunpack.c.0.s8 %v1525
        %v1527 = vlaneseq
        %v1528 = vshrl.u32 %v1527, 7
        %v1529 = vsub.s32 %v1526, %v1528
        %v1530 = vrot.slane %v1514, %v1529
        %v1532 = vunpack.c.l.s4 1966171168
        %v1533 = vunpack.c.0.s8 %v1532
        %v1534 = vlaneseq
        %v1535 = vshrl.u32 %v1534, 7
        %v1536 = vsub.s32 %v1533, %v1535
        %v1537 = vrot.slane %v1515, %v1536
        %v1539 = vunpack.c.l.s4 1966171168
        %v1540 = vunpack.c.0.s8 %v1539
        %v1541 = vlaneseq
        %v1542 = vshrl.u32 %v1541, 7
        %v1543 = vsub.s32 %v1540, %v1542
        %v1544 = vrot.slane %v1516, %v1543
        %v1545 = vcombine.high %v1523, %v1523
        %v1546 = vcombine.high %v1530, %v1530
        %v1547 = vcombine.high %v1537, %v1537
        %v1548 = vcombine.high %v1544, %v1544
        %v1549 = vlaneseq
        %v1550 = vshrl.u32 %v1549, 7
        %v1551 = vsub.s32 0, %v1550
        %v1552 = vrot.slane %v1523, %v1551
        %v1553 = vlaneseq
        %v1554 = vshrl.u32 %v1553, 7
        %v1555 = vsub.s32 0, %v1554
        %v1556 = vrot.slane %v1537, %v1555
        %v1557 = vlaneseq
        %v1558 = vshrl.u32 %v1557, 7
        %v1559 = vsub.s32 0, %v1558
        %v1560 = vrot.slane %v1545, %v1559
        %v1561 = vlaneseq
        %v1562 = vshrl.u32 %v1561, 7
        %v1563 = vsub.s32 0, %v1562
        %v1564 = vrot.slane %v1547, %v1563
        %v1565 = vlaneseq
        %v1566 = vshrl.u32 %v1565, 7
        %v1567 = vsub.s32 0, %v1566
        %v1568 = vrot.slane %v1530, %v1567
        %v1569 = vlaneseq
        %v1570 = vshrl.u32 %v1569, 7
        %v1571 = vsub.s32 0, %v1570
        %v1572 = vrot.slane %v1544, %v1571
        %v1573 = vlaneseq
        %v1574 = vshrl.u32 %v1573, 7
        %v1575 = vsub.s32 0, %v1574
        %v1576 = vrot.slane %v1546, %v1575
        %v1577 = vlaneseq
        %v1578 = vshrl.u32 %v1577, 7
        %v1579 = vsub.s32 0, %v1578
        %v1580 = vrot.slane %v1548, %v1579
        %v1589 = vmul.f32 %v1417, %v1552
        %v1590 = vmul.f32 %v1421, %v1552
        %v1591 = vmul.f32 %v1428, %v1556
        %v1592 = vmul.f32 %v1432, %v1556
        %v1593 = vmul.f32 %v1439, %v1560
        %v1594 = vmul.f32 %v1443, %v1560
        %v1595 = vmul.f32 %v1450, %v1564
        %v1596 = vmul.f32 %v1454, %v1564
        %v1597 = vmul.f32 %v1461, %v1568
        %v1598 = vmul.f32 %v1465, %v1568
        %v1599 = vmul.f32 %v1472, %v1572
        %v1600 = vmul.f32 %v1476, %v1572
        %v1601 = vmul.f32 %v1483, %v1576
        %v1602 = vmul.f32 %v1487, %v1576
        %v1603 = vmul.f32 %v1494, %v1580
        %v1604 = vmul.f32 %v1498, %v1580
        %v1605 = vmul.f32 %v1395, %v1589
        %v1606 = vmul.f32 %v1396, %v1590
        %v1607 = vmul.f32 %v1397, %v1591
        %v1608 = vmul.f32 %v1398, %v1592
        %v1609 = vmul.f32 %v1399, %v1593
        %v1610 = vmul.f32 %v1400, %v1594
        %v1611 = vmul.f32 %v1401, %v1595
        %v1612 = vmul.f32 %v1402, %v1596
        %v1613 = vmul.f32 %v1403, %v1597
        %v1614 = vmul.f32 %v1404, %v1598
        %v1615 = vmul.f32 %v1405, %v1599
        %v1616 = vmul.f32 %v1406, %v1600
        %v1617 = vmul.f32 %v1407, %v1601
        %v1618 = vmul.f32 %v1408, %v1602
        %v1619 = vmul.f32 %v1409, %v1603
        %v1620 = vmul.f32 %v1410, %v1604
        %v1621 = vsub.f32 %v1042, %v1605
        %v1622 = vsub.f32 %v1043, %v1606
        %v1623 = vsub.f32 %v1044, %v1607
        %v1624 = vsub.f32 %v1045, %v1608
        %v1625 = vsub.f32 %v1046, %v1609
        %v1626 = vsub.f32 %v1047, %v1610
        %v1627 = vsub.f32 %v1048, %v1611
        %v1628 = vsub.f32 %v1049, %v1612
        %v1629 = vsub.f32 %v1050, %v1613
        %v1630 = vsub.f32 %v1051, %v1614
        %v1631 = vsub.f32 %v1052, %v1615
        %v1632 = vsub.f32 %v1053, %v1616
        %v1633 = vsub.f32 %v1054, %v1617
        %v1634 = vsub.f32 %v1055, %v1618
        %v1635 = vsub.f32 %v1056, %v1619
        %v1636 = vsub.f32 %v1057, %v1620
        %v1637 = vand.u32 2147483647, %v1621
        %v1638 = vand.u32 2147483647, %v1622
        %v1639 = vand.u32 2147483647, %v1623
        %v1640 = vand.u32 2147483647, %v1624
        %v1641 = vand.u32 2147483647, %v1625
        %v1642 = vand.u32 2147483647, %v1626
        %v1643 = vand.u32 2147483647, %v1627
        %v1644 = vand.u32 2147483647, %v1628
        %v1645 = vand.u32 2147483647, %v1629
        %v1646 = vand.u32 2147483647, %v1630
        %v1647 = vand.u32 2147483647, %v1631
        %v1648 = vand.u32 2147483647, %v1632
        %v1649 = vand.u32 2147483647, %v1633
        %v1650 = vand.u32 2147483647, %v1634
        %v1651 = vand.u32 2147483647, %v1635
        %v1652 = vand.u32 2147483647, %v1636
        %v1653 = vmin.f32 %v1637, 1.0
        %v1654 = vmin.f32 %v1638, 1.0
        %v1655 = vmin.f32 %v1639, 1.0
        %v1656 = vmin.f32 %v1640, 1.0
        %v1657 = vmin.f32 %v1641, 1.0
        %v1658 = vmin.f32 %v1642, 1.0
        %v1659 = vmin.f32 %v1643, 1.0
        %v1660 = vmin.f32 %v1644, 1.0
        %v1661 = vmin.f32 %v1645, 1.0
        %v1662 = vmin.f32 %v1646, 1.0
        %v1663 = vmin.f32 %v1647, 1.0
        %v1664 = vmin.f32 %v1648, 1.0
        %v1665 = vmin.f32 %v1649, 1.0
        %v1666 = vmin.f32 %v1650, 1.0
        %v1667 = vmin.f32 %v1651, 1.0
        %v1668 = vmin.f32 %v1652, 1.0
        %v1669 = vmul.f32 %v1653, 0.5
        %v1670 = vmul.f32 %v1654, 0.5
        %v1671 = vmul.f32 %v1655, 0.5
        %v1672 = vmul.f32 %v1656, 0.5
        %v1673 = vmul.f32 %v1657, 0.5
        %v1674 = vmul.f32 %v1658, 0.5
        %v1675 = vmul.f32 %v1659, 0.5
        %v1676 = vmul.f32 %v1660, 0.5
        %v1677 = vmul.f32 %v1661, 0.5
        %v1678 = vmul.f32 %v1662, 0.5
        %v1679 = vmul.f32 %v1663, 0.5
        %v1680 = vmul.f32 %v1664, 0.5
        %v1681 = vmul.f32 %v1665, 0.5
        %v1682 = vmul.f32 %v1666, 0.5
        %v1683 = vmul.f32 %v1667, 0.5
        %v1684 = vmul.f32 %v1668, 0.5
        %v1685 = vsub.f32 %v1637, %v1669
        %v1686 = vsub.f32 %v1638, %v1670
        %v1687 = vsub.f32 %v1639, %v1671
        %v1688 = vsub.f32 %v1640, %v1672
        %v1689 = vsub.f32 %v1641, %v1673
        %v1690 = vsub.f32 %v1642, %v1674
        %v1691 = vsub.f32 %v1643, %v1675
        %v1692 = vsub.f32 %v1644, %v1676
        %v1693 = vsub.f32 %v1645, %v1677
        %v1694 = vsub.f32 %v1646, %v1678
        %v1695 = vsub.f32 %v1647, %v1679
        %v1696 = vsub.f32 %v1648, %v1680
        %v1697 = vsub.f32 %v1649, %v1681
        %v1698 = vsub.f32 %v1650, %v1682
        %v1699 = vsub.f32 %v1651, %v1683
        %v1700 = vsub.f32 %v1652, %v1684
        %v1701 = vmul.f32 %v1653, %v1685
        %v1702 = vmul.f32 %v1654, %v1686
        %v1703 = vmul.f32 %v1655, %v1687
        %v1704 = vmul.f32 %v1656, %v1688
        %v1705 = vmul.f32 %v1657, %v1689
        %v1706 = vmul.f32 %v1658, %v1690
        %v1707 = vmul.f32 %v1659, %v1691
        %v1708 = vmul.f32 %v1660, %v1692
        %v1709 = vmul.f32 %v1661, %v1693
        %v1710 = vmul.f32 %v1662, %v1694
        %v1711 = vmul.f32 %v1663, %v1695
        %v1712 = vmul.f32 %v1664, %v1696
        %v1713 = vmul.f32 %v1665, %v1697
        %v1714 = vmul.f32 %v1666, %v1698
        %v1715 = vmul.f32 %v1667, %v1699
        %v1716 = vmul.f32 %v1668, %v1700
        %vm1717 = vcmask 130048
        %v1718 = vsel %vm1717, %v1701, 0.0
        %v1719 = vsel %vm1717, %v1703, 0.0
        %v1720 = vadd.f32 %v1718, %v1719
        %v1721 = vsel %vm1717, %v1705, 0.0
        %v1722 = vadd.f32 %v1720, %v1721
        %v1723 = vsel %vm1717, %v1707, 0.0
        %v1724 = vadd.f32 %v1722, %v1723
        %v1725 = vsel %vm1717, %v1709, 0.0
        %v1726 = vadd.f32 %v1724, %v1725
        %v1727 = vsel %vm1717, %v1711, 0.0
        %v1728 = vadd.f32 %v1726, %v1727
        %v1729 = vsel %vm1717, %v1713, 0.0
        %v1730 = vadd.f32 %v1728, %v1729
        %v1731 = vsel %vm1717, %v1715, 0.0
        %v1732 = vadd.f32 %v1730, %v1731
        %v1733 = vsel %vm1717, %v1702, 0.0
        %v1734 = vsel %vm1717, %v1704, 0.0
        %v1735 = vadd.f32 %v1733, %v1734
        %v1736 = vsel %vm1717, %v1706, 0.0
        %v1737 = vadd.f32 %v1735, %v1736
        %v1738 = vsel %vm1717, %v1708, 0.0
        %v1739 = vadd.f32 %v1737, %v1738
        %v1740 = vsel %vm1717, %v1710, 0.0
        %v1741 = vadd.f32 %v1739, %v1740
        %v1742 = vsel %vm1717, %v1712, 0.0
        %v1743 = vadd.f32 %v1741, %v1742
        %v1744 = vsel %vm1717, %v1714, 0.0
        %v1745 = vadd.f32 %v1743, %v1744
        %v1746 = vsel %vm1717, %v1716, 0.0
        %v1747 = vadd.f32 %v1745, %v1746
        %v1748 = vsel %vm1717, %v1732, 0.0
        %1749 = vadd.xlane.f32.xlu0 %v1748
        %v1750 = vpop.xlane.xlu0 %1749
        %v1751 = vsel %vm1717, %v1747, 0.0
        %1752 = vadd.xlane.f32.xlu0 %v1751
        %v1753 = vpop.xlane.xlu0 %1752
        %v1754 = vadd.f32 %v1750, %v1753
        %v1755 = vrot.slane %v1754, 4
        %v1756 = vadd.f32 %v1754, %v1755
        %v1757 = vrot.slane %v1756, 2
        %v1758 = vadd.f32 %v1756, %v1757
        %v1759 = vrot.slane %v1758, 1
        %v1760 = vadd.f32 %v1758, %v1759
        %s1761 = sld [smem:[#allocation2]]
        %s1762 = sld [smem:[#allocation2 + $0x1]]
        %v1763 = vrcp.pop 4096.0
        %s1764 = vtos %v1763
        %s1765 = smul.f32 %s1762, %s1764
        %v1766 = vstv %s1765
        %v1767 = vmul.f32 %v1766, %v1760
        %vm1768 = vcmask 0
        %1769 = vst.msk [vmem:[%s188] sm:$0x1] %vm1768, %v1767
        %p1770 = scmp.eq.s32.totalorder %s17, 0
        // Predicated region
        $region45: #{tpu_custom_call.1} parent=31 // pred_check
          %p1771 = pneg %p1770
        $region46: #{tpu_custom_call.1} parent=31 // pred_check_branch
          %1773 = sbr.rel (%p1771) target = $region48
        $region47: #{tpu_custom_call.1} parent=31 // pred_region
          %v1774 = vadd.s32 %v491, 8
          %vm1775 = vcmp.eq.s32.totalorder %v491, %v489
          %vm1776 = vcmp.eq.s32.totalorder %v1774, %v489
          %1777 = vadd.xlane.f32.xlu0 %v269
          %v1778 = vpop.xlane.xlu0 %1777
          %1779 = vadd.xlane.f32.xlu0 %v270
          %v1780 = vpop.xlane.xlu0 %1779
          %v1781 = vadd.f32 %v1778, %v573
          %v1782 = vadd.f32 %v1780, %v573
          %v1783 = vmul.f32 %v261, 2.0
          %v1784 = vmul.f32 %v266, 2.0
          %v1785 = vsub.f32 %v1781, %v1783
          %v1786 = vsub.f32 %v1782, %v1784
          %v1787 = vmax.f32 %v1785, 1e-12
          %v1788 = vmax.f32 %v1786, 1e-12
          %v1789 = vrsqrt.pop %v1787
          %v1790 = vmul.f32 %v1787, %v1789
          %vm1791 = vcmp.eq.f32.partialorder %v1787, inf
          %v1792 = vsel %vm1791, %v1787, %v1790
          %vm1793 = vcmp.eq.f32.partialorder %v1787, 0.0
          %v1794 = vand.u32 %v1787, 2147483648
          %v1795 = vsel %vm1793, %v1794, %v1792
          %v1796 = vrsqrt.pop %v1788
          %v1797 = vmul.f32 %v1788, %v1796
          %vm1798 = vcmp.eq.f32.partialorder %v1788, inf
          %v1799 = vsel %vm1798, %v1788, %v1797
          %vm1800 = vcmp.eq.f32.partialorder %v1788, 0.0
          %v1801 = vand.u32 %v1788, 2147483648
          %v1802 = vsel %vm1800, %v1801, %v1799
          %v1803 = vsel %vm1775, 0.0, %v1795
          %v1804 = vsel %vm1776, 0.0, %v1802
          %v1805 = vsel %vm1717, %v1803, 0.0
          %1806 = vadd.xlane.f32.xlu0 %v1805
          %v1807 = vpop.xlane.xlu0 %1806
          %v1808 = vsel %vm1717, %v1804, 0.0
          %1809 = vadd.xlane.f32.xlu0 %v1808
          %v1810 = vpop.xlane.xlu0 %1809
          %v1811 = vadd.f32 %v1807, %v1810
          %v1812 = vrot.slane %v1811, 4
          %v1813 = vadd.f32 %v1811, %v1812
          %v1814 = vrot.slane %v1813, 2
          %v1815 = vadd.f32 %v1813, %v1814
          %v1816 = vrot.slane %v1815, 1
          %v1817 = vadd.f32 %v1815, %v1816
          %v1818 = vrcp.pop %v1817
          %v1819 = vmul.f32 240.0, %v1818
          %v1820 = vmul.f32 %v1803, %v1819
          %v1821 = vmul.f32 %v1804, %v1819
          %1822 = vadd.xlane.f32.xlu0 %v416
          %v1823 = vpop.xlane.xlu0 %1822
          %1824 = vadd.xlane.f32.xlu0 %v417
          %v1825 = vpop.xlane.xlu0 %1824
          %v1826 = vadd.f32 %v1823, %v1136
          %v1827 = vadd.f32 %v1825, %v1136
          %v1828 = vmul.f32 %v408, 2.0
          %v1829 = vmul.f32 %v413, 2.0
          %v1830 = vsub.f32 %v1826, %v1828
          %v1831 = vsub.f32 %v1827, %v1829
          %v1832 = vmax.f32 %v1830, 1e-12
          %v1833 = vmax.f32 %v1831, 1e-12
          %v1834 = vrsqrt.pop %v1832
          %v1835 = vmul.f32 %v1832, %v1834
          %vm1836 = vcmp.eq.f32.partialorder %v1832, inf
          %v1837 = vsel %vm1836, %v1832, %v1835
          %vm1838 = vcmp.eq.f32.partialorder %v1832, 0.0
          %v1839 = vand.u32 %v1832, 2147483648
          %v1840 = vsel %vm1838, %v1839, %v1837
          %v1841 = vrsqrt.pop %v1833
          %v1842 = vmul.f32 %v1833, %v1841
          %vm1843 = vcmp.eq.f32.partialorder %v1833, inf
          %v1844 = vsel %vm1843, %v1833, %v1842
          %vm1845 = vcmp.eq.f32.partialorder %v1833, 0.0
          %v1846 = vand.u32 %v1833, 2147483648
          %v1847 = vsel %vm1845, %v1846, %v1844
          %v1848 = vsel %vm1775, 0.0, %v1840
          %v1849 = vsel %vm1776, 0.0, %v1847
          %v1850 = vsel %vm1717, %v1848, 0.0
          %1851 = vadd.xlane.f32.xlu0 %v1850
          %v1852 = vpop.xlane.xlu0 %1851
          %v1853 = vsel %vm1717, %v1849, 0.0
          %1854 = vadd.xlane.f32.xlu0 %v1853
          %v1855 = vpop.xlane.xlu0 %1854
          %v1856 = vadd.f32 %v1852, %v1855
          %v1857 = vrot.slane %v1856, 4
          %v1858 = vadd.f32 %v1856, %v1857
          %v1859 = vrot.slane %v1858, 2
          %v1860 = vadd.f32 %v1858, %v1859
          %v1861 = vrot.slane %v1860, 1
          %v1862 = vadd.f32 %v1860, %v1861
          %v1863 = vrcp.pop %v1862
          %v1864 = vmul.f32 240.0, %v1863
          %v1865 = vmul.f32 %v1848, %v1864
          %v1866 = vmul.f32 %v1849, %v1864
          %v1867 = vsub.f32 %v1820, %v1865
          %v1868 = vsub.f32 %v1821, %v1866
          %v1869 = vand.u32 2147483647, %v1867
          %v1870 = vand.u32 2147483647, %v1868
          %v1871 = vmin.f32 %v1869, 1.0
          %v1872 = vmin.f32 %v1870, 1.0
          %v1873 = vmul.f32 %v1871, 0.5
          %v1874 = vmul.f32 %v1872, 0.5
          %v1875 = vsub.f32 %v1869, %v1873
          %v1876 = vsub.f32 %v1870, %v1874
          %v1877 = vmul.f32 %v1871, %v1875
          %v1878 = vmul.f32 %v1872, %v1876
          %v1879 = vsel %vm1717, %v1877, 0.0
          %1880 = vadd.xlane.f32.xlu0 %v1879
          %v1881 = vpop.xlane.xlu0 %1880
          %v1882 = vsel %vm1717, %v1878, 0.0
          %1883 = vadd.xlane.f32.xlu0 %v1882
          %v1884 = vpop.xlane.xlu0 %1883
          %v1885 = vadd.f32 %v1881, %v1884
          %v1886 = vrot.slane %v1885, 4
          %v1887 = vadd.f32 %v1885, %v1886
          %v1888 = vrot.slane %v1887, 2
          %v1889 = vadd.f32 %v1887, %v1888
          %v1890 = vrot.slane %v1889, 1
          %v1891 = vadd.f32 %v1889, %v1890
          %v1892 = vld [vmem:[%s188] sm:$0x1]
          %v1893 = vrcp.pop 256.0
          %s1894 = vtos %v1893
          %s1895 = smul.f32 %s1761, %s1894
          %v1896 = vstv %s1895
          %v1897 = vmul.f32 %v1896, %v1891
          %v1898 = vadd.f32 %v1892, %v1897
          %1899 = vst.msk [vmem:[%s188] sm:$0x1] %vm1768, %v1898
        $region48: #{tpu_custom_call.1} parent=31 // pred_fallthru
          _
        %p1900 = scmp.lt.s32.totalorder %s17, 1
        %s1901 = scalar_select %p1900, %s17, 1
        %s1902 = scalar_lea.vmem %s3, %s1901
        // Predicated region
        $region49: #{tpu_custom_call.1} parent=31 // pred_check
          %p1903 = pneg %p98
        $region50: #{tpu_custom_call.1} parent=31 // pred_check_branch
          %1905 = sbr.rel (%p1903) target = $region52
        $region51: #{tpu_custom_call.1} parent=31 // pred_region
          _
        $region52: #{tpu_custom_call.1} parent=31 // pred_fallthru
          _
      $region32: #{tpu_custom_call.1} parent=5 // pred_fallthru
        _
      %p1906 = scmp.le.s32.totalorder 2, %s12
      // Predicated region
      $region53: #{tpu_custom_call.1} parent=5 // pred_check
        %p1907 = pneg %p1906
      $region54: #{tpu_custom_call.1} parent=5 // pred_check_branch
        %1909 = sbr.rel (%p1907) target = $region56
      $region55: #{tpu_custom_call.1} parent=5 // pred_region
        %s1910 = ssub.s32 %s12, 2
        // Predicated region
        $region57: #{tpu_custom_call.1} parent=55 // pred_check
          %p1911 = pneg %p104
        $region58: #{tpu_custom_call.1} parent=55 // pred_check_branch
          %1913 = sbr.rel (%p1911) target = $region60
        $region59: #{tpu_custom_call.1} parent=55 // pred_region
          %p1914 = scmp.lt.s32.totalorder %s18, 1
          %s1915 = scalar_select %p1914, %s18, 1
          %s1916 = scalar_lea.vmem %s3, %s1915
        $region60: #{tpu_custom_call.1} parent=55 // pred_fallthru
          _
      $region56: #{tpu_custom_call.1} parent=5 // pred_fallthru
        _
    $region6: #{tpu_custom_call.1} parent=1 // loop_footer
      %s16 = sadd.s32 1, %s12
    $region7: #{tpu_custom_call.1} parent=1 // loop_footer_branch
      %11 = sbr.rel target = $region3
    $region8: #{tpu_custom_call.1} parent=1 // loop_exit
      _
    %1917 = vsyncpa [#allocation3], 1
    %s1918 = scalar_lea.sflag [#allocation3], 1
    %1919 = vsyncpa %s1918, 1
    %1920 = vsyncpa [#allocation7], 1
    %1921 = vsyncpa [#allocation4], 1
    %s1922 = scalar_lea.sflag [#allocation4], 1
    %1923 = vsyncpa %s1922, 1

</llo_original>
